<compile_context>
chip_gen: v6e
topology: v6e:2x2x1
jax: 0.10.0
libtpu: 0.0.40
codegen_flags: <defaults>
</compile_context>

<pallas_src>
import functools

import numpy as np
import jax
import jax.numpy as jnp
from jax.experimental import pallas as pl
from jax.experimental.pallas import tpu as pltpu

EPS = 1e-9


def lit_kernel(alpha_ref, wq_ref, wk_ref, x_ref, mask_ref, res_ref, out_ref,
               *, n_head):
    x = x_ref[...]                        # (TB, N, d) bf16, gathered embeddings
    mask = mask_ref[...]                  # (TB, N) f32, 1.0 where token is pad
    TB, N, d = x.shape
    H = n_head
    dh = d // H

    # q/k projections (Linear, no bias): x @ W^T on the MXU (bf16 in, f32 acc),
    # kept bf16 afterwards.  The d**-0.5 attention scale is pre-folded into Wq
    # on the host, so no per-score scaling pass is needed here.
    q = jax.lax.dot_general(x, wq_ref[...], (((2,), (1,)), ((), ())),
                            preferred_element_type=jnp.float32
                            ).astype(jnp.bfloat16)               # (TB, N, d)
    k = jax.lax.dot_general(x, wk_ref[...], (((2,), (1,)), ((), ())),
                            preferred_element_type=jnp.float32
                            ).astype(jnp.bfloat16)               # (TB, N, d)

    # Hoisted mask transforms (shared across all heads).
    # NOTE: additive -1e9 bias == masked_fill while |scaled logits| << 1e9
    # (true here: bf16 operands, scale already applied).
    key_bias = jnp.where(mask > 0.5, jnp.float32(-1e9), jnp.float32(0.0))  # (TB,N)
    valid_q = 1.0 - mask                                                   # (TB,N)
    length = jnp.sum(valid_q, axis=-1, keepdims=True)                      # (TB,1)

    if H == 1:
        # Scores (MXU, bf16 in / f32 acc).
        a = jnp.einsum('bqe,bke->bqk', q, k,
                       preferred_element_type=jnp.float32)       # (TB,N,N)
        a = a + key_bias[:, None, :]
        p = jnp.exp(a - jnp.max(a, axis=-1, keepdims=True))
        l = jnp.sum(p, axis=-1, keepdims=True)
        # Fused: softmax normalization * valid-query mask in ONE (TB,N,N)
        # multiply; `att` never materialized.  Column weights = sum of the
        # normalized scores over valid query rows.
        rowscale = valid_q[:, :, None] * pl.reciprocal(l, approx=True)  # (TB,N,1)
        w = jnp.sum(p * rowscale, axis=1)                        # (TB,N) f32
        # Weighted sum of token embeddings: ride the MXU ((1,N)@(N,d) per seq)
        # instead of a VPU multiply + XLU sublane reduce.
        s = jnp.einsum('bqk,bkd->bqd', w[:, None, :].astype(jnp.bfloat16), x,
                       preferred_element_type=jnp.float32)[:, 0, :]   # (TB,d)
    else:
        # Batched multi-head formulation: merge (batch, head) into one leading
        # dim -> no sub-128 lane slicing and no lane-dim concatenate.
        qh = jnp.swapaxes(q.reshape(TB, N, H, dh), 1, 2).reshape(TB * H, N, dh)
        kh = jnp.swapaxes(k.reshape(TB, N, H, dh), 1, 2).reshape(TB * H, N, dh)
        xh = jnp.swapaxes(x.reshape(TB, N, H, dh), 1, 2).reshape(TB * H, N, dh)
        bias_h = jnp.broadcast_to(key_bias[:, None, :], (TB, H, N)
                                  ).reshape(TB * H, N)
        validq_h = jnp.broadcast_to(valid_q[:, None, :], (TB, H, N)
                                    ).reshape(TB * H, N)
        a = jnp.einsum('bqe,bke->bqk', qh, kh,
                       preferred_element_type=jnp.float32)       # (TB*H,N,N)
        a = a + bias_h[:, None, :]
        p = jnp.exp(a - jnp.max(a, axis=-1, keepdims=True))
        l = jnp.sum(p, axis=-1, keepdims=True)
        rowscale = validq_h[:, :, None] * pl.reciprocal(l, approx=True)
        w = jnp.sum(p * rowscale, axis=1)                        # (TB*H,N)
        s = jnp.einsum('bqk,bkd->bqd', w[:, None, :].astype(jnp.bfloat16), xh,
                       preferred_element_type=jnp.float32)[:, 0, :]   # (TB*H,dh)
        s = s.reshape(TB, d)

    # Mean over valid tokens (exact division on the tiny (TB,1) tensor) and
    # residual blend, all f32.
    yavg = s / (length + EPS)
    alpha = alpha_ref[0, 0]
    out_ref[...] = alpha * yavg + (1.0 - alpha) * res_ref[...]


def _vmem_limit_bytes():
    """Scoped-VMEM limit per TPU generation (v7x only has 64 MiB per core)."""
    try:
        cap = int(pltpu.get_tpu_info().vmem_capacity_bytes)
    except Exception:
        cap = 64 * 1024 * 1024
    if cap <= 64 * 1024 * 1024:
        return 48 * 1024 * 1024          # v7x: leave headroom under 64 MiB
    return 100 * 1024 * 1024             # v5e / v6e: 128 MiB physical


def _pick_block_b(B, N, d, n_head, target, vmem_budget_bytes, min_grid=2):
    """Largest block_b that divides B, satisfies the (8,128) rule on the
    mask/residual/out blocks, fits a per-sequence VMEM estimate (including the
    live (H,N,N) softmax temporaries), and keeps >= `min_grid` grid steps so
    the "parallel" batch axis can shard across v7x's two TensorCores."""
    per_seq = (
        2 * N * d * 2              # x tile, double-buffered bf16
        + 2 * N * d * 2            # q, k live (bf16)
        + 4 * n_head * N * N * 4   # score / exp / fused-norm temporaries (f32)
        + 8 * N * 4                # mask double-buffer + key_bias / valid_q
        + 16 * d * 4               # residual/out double buffers + s/yavg temps
    )
    cap = max(8, int(vmem_budget_bytes // max(per_seq, 1)))
    tgt = max(1, min(target, cap, B))
    if B >= 2 * min_grid:
        tgt = min(tgt, B // min_grid)   # keep the grid >= min_grid steps
    for b in range(tgt, 0, -1):
        if B % b == 0 and (b % 8 == 0 or b == B):
            return b
    return B


def lit_forward(e, e_residual, alpha, idx, sequence, mask, wq, wk,
                *, n_head=1, block_b=128):
    bs, N_bs = idx.shape
    N_max = sequence.shape[1]
    d = e.shape[1]
    B = bs * N_bs

    vmem_limit = _vmem_limit_bytes()
    block_b = _pick_block_b(B, N_max, d, n_head, block_b,
                            int(0.7 * vmem_limit))

    # Glue: gathers / reshapes in plain JAX.  The gather produces bf16 directly
    # so the materialized x stream is half the bytes of an f32 path.
    seq = sequence[idx]                                   # (bs, N_bs, N_max)
    m = mask[idx]                                         # (bs, N_bs, N_max) bool
    x_bf = e.astype(jnp.bfloat16)[seq].reshape(B, N_max, d)

    mask_f = m.reshape(B, N_max).astype(jnp.float32)
    res_f = e_residual.reshape(B, d).astype(jnp.float32)
    alpha_arr = jnp.asarray(alpha, jnp.float32).reshape(1, 1)
    scale = float(d) ** -0.5
    wq_bf = (wq * scale).astype(jnp.bfloat16)   # attention scale folded into Wq
    wk_bf = wk.astype(jnp.bfloat16)

    out = pl.pallas_call(
        functools.partial(lit_kernel, n_head=n_head),
        out_shape=jax.ShapeDtypeStruct((B, d), jnp.float32),
        grid_spec=pltpu.PrefetchScalarGridSpec(
            num_scalar_prefetch=0,
            grid=(B // block_b,),
            in_specs=[
                pl.BlockSpec(memory_space=pltpu.MemorySpace.SMEM),        # alpha
                pl.BlockSpec((d, d), lambda i: (0, 0)),                   # Wq (scaled)
                pl.BlockSpec((d, d), lambda i: (0, 0)),                   # Wk
                pl.BlockSpec((block_b, N_max, d), lambda i: (i, 0, 0)),   # x
                pl.BlockSpec((block_b, N_max), lambda i: (i, 0)),         # mask
                pl.BlockSpec((block_b, d), lambda i: (i, 0)),             # residual
            ],
            out_specs=pl.BlockSpec((block_b, d), lambda i: (i, 0)),
        ),
        compiler_params=pltpu.CompilerParams(
            dimension_semantics=("parallel",),   # shards across v7x's 2 TCs
            vmem_limit_bytes=vmem_limit,
        ),
    )(alpha_arr, wq_bf, wk_bf, x_bf, mask_f, res_f)
    return out.reshape(bs, N_bs, d)


def lit_reference(e, e_residual, alpha, idx, sequence, mask, wq, wk, n_head):
    """Pure-JAX f32 transliteration of the PyTorch forward (for validation)."""
    seq = sequence[idx]
    m = mask[idx]                                    # (bs, N_bs, N) bool
    x = e[seq].astype(jnp.float32)                   # (bs, N_bs, N, d)
    bs, N_bs, N, d = x.shape
    H = n_head
    dh = d // H
    q = x @ wq.T
    k = x @ wk.T
    qh = jnp.swapaxes(q.reshape(bs, N_bs, N, H, dh), 2, 3)   # (bs,N_bs,H,N,dh)
    kh = jnp.swapaxes(k.reshape(bs, N_bs, N, H, dh), 2, 3)
    A = (qh * (d ** -0.5)) @ jnp.swapaxes(kh, -1, -2)        # (bs,N_bs,H,N,N)
    A = jnp.where(m[:, :, None, None, :], -1e9, A)
    att = jax.nn.softmax(A, axis=-1)
    vh = jnp.swapaxes(x.reshape(bs, N_bs, N, H, dh), 2, 3)
    y = att @ vh
    y = jnp.swapaxes(y, 2, 3).reshape(bs, N_bs, N, d)
    y = jnp.where(m[:, :, :, None], 0.0, y)
    length = jnp.sum(1.0 - m.astype(jnp.float32), axis=-1, keepdims=True)
    out = y.sum(-2) / (length + EPS)
    return alpha * out + (1.0 - alpha) * e_residual


if __name__ == "__main__":
    key = jax.random.PRNGKey(0)
    bs, N_bs = 2, 16          # batch of index tiles -> B = 32 sequences
    dim = 32                  # conf['dim'] (small for the demo)
    n_head = 1                # conf['n_head'] default
    n_layer = 3               # conf['n_layer'] default
    num_token = 8             # N_max (conf['num_token'], small for the demo)
    num_sequence = 12         # rows of the sequence table (graph rows)
    num_items = 20            # graph.shape[1] -> vocab of e
    alpha = 0.7

    k_len, k_tok, k_e, k_res, k_idx, k_w = jax.random.split(key, 6)

    # Synthetic padded sequence table (stand-in for __generate_sequences).
    lens = jax.random.randint(k_len, (num_sequence,), 1, num_token + 1)
    tok = jax.random.randint(k_tok, (num_sequence, num_token), 0, num_items)
    pos = jnp.arange(num_token)[None, :]
    mask = pos >= lens[:, None]                      # True where padding
    sequence = jnp.where(mask, 0, tok).astype(jnp.int32)

    e = jax.random.normal(k_e, (num_items, dim), jnp.float32)
    e_residual = jax.random.normal(k_res, (bs, N_bs, dim), jnp.float32)
    idx = jax.random.randint(k_idx, (bs, N_bs), 0, num_sequence)

    # Deterministic SelfAttention weights for each of the n_layer layers.
    wkeys = jax.random.split(k_w, 2 * n_layer)
    wq_layers = [jax.random.normal(wkeys[2 * l], (dim, dim), jnp.float32)
                 * (dim ** -0.5) for l in range(n_layer)]
    wk_layers = [jax.random.normal(wkeys[2 * l + 1], (dim, dim), jnp.float32)
                 * (dim ** -0.5) for l in range(n_layer)]

    layer = 0
    out = lit_forward(e, e_residual, alpha, idx, sequence, mask,
                      wq_layers[layer], wk_layers[layer],
                      n_head=n_head, block_b=16)      # grid of >= 2 steps
    out = jax.block_until_ready(out)

    ref = lit_reference(e, e_residual, alpha, idx, sequence, mask,
                        wq_layers[layer], wk_layers[layer], n_head)
    ref = jax.block_until_ready(ref)

    assert out.shape == (bs, N_bs, dim)
    # bf16 MXU operands + approx softmax reciprocal => compare to f32 ref with
    # a loose, bf16-level tolerance (length division is now exact).
    assert np.allclose(np.asarray(out), np.asarray(ref), rtol=5e-2, atol=5e-2), (
        np.max(np.abs(np.asarray(out) - np.asarray(ref))))
    print("KERNEL_OK")
</pallas_src>

<mosaic_0001>
module attributes {stable_mosaic.version = 11 : i64} {
  func.func @lit_kernel(%arg0: i32, %arg1: memref<1x1xf32, #tpu.memory_space<smem>>, %arg2: memref<32x32xbf16, #tpu.memory_space<vmem>>, %arg3: memref<32x32xbf16, #tpu.memory_space<vmem>>, %arg4: memref<16x8x32xbf16, #tpu.memory_space<vmem>>, %arg5: memref<16x8xf32, #tpu.memory_space<vmem>>, %arg6: memref<16x32xf32, #tpu.memory_space<vmem>>, %arg7: memref<16x32xf32, #tpu.memory_space<vmem>>) attributes {dimension_semantics = [#tpu.dimension_semantics<parallel>], iteration_bounds = array<i64: 2>, scalar_prefetch = 0 : i64, scratch_operands = 0 : i64, tpu.core_type = #tpu.core_type<tc>, window_params = [{transform_indices = @transform_0, window_bounds = array<i64: 1, 1>}, {pipeline_mode = #tpu.pipeline_mode<synchronous>, transform_indices = @transform_1, window_bounds = array<i64: 32, 32>}, {pipeline_mode = #tpu.pipeline_mode<synchronous>, transform_indices = @transform_2, window_bounds = array<i64: 32, 32>}, {transform_indices = @transform_3, window_bounds = array<i64: 16, 8, 32>}, {transform_indices = @transform_4, window_bounds = array<i64: 16, 8>}, {transform_indices = @transform_5, window_bounds = array<i64: 16, 32>}, {transform_indices = @transform_6, window_bounds = array<i64: 16, 32>}]} {
    %c0 = arith.constant 0 : index
    %c0_0 = arith.constant 0 : index
    %c0_1 = arith.constant 0 : index
    %0 = vector.load %arg4[%c0, %c0_0, %c0_1] : memref<16x8x32xbf16, #tpu.memory_space<vmem>>, vector<16x8x32xbf16>
    %c0_2 = arith.constant 0 : index
    %c0_3 = arith.constant 0 : index
    %1 = vector.load %arg5[%c0_2, %c0_3] : memref<16x8xf32, #tpu.memory_space<vmem>>, vector<16x8xf32>
    %c0_4 = arith.constant 0 : index
    %c0_5 = arith.constant 0 : index
    %2 = vector.load %arg2[%c0_4, %c0_5] : memref<32x32xbf16, #tpu.memory_space<vmem>>, vector<32x32xbf16>
    %cst = arith.constant dense<0.000000e+00> : vector<16x8x32xf32>
    %3 = tpu.matmul %0, %2, %cst {dimension_numbers = #tpu.dot_dimension_numbers<[2], [1], [0, 1], [0], [0, 0, 0, 1, 1, 0], [], []>} : vector<16x8x32xbf16>, vector<32x32xbf16>, vector<16x8x32xf32> -> vector<16x8x32xf32>
    %4 = arith.truncf %3 : vector<16x8x32xf32> to vector<16x8x32xbf16>
    %c0_6 = arith.constant 0 : index
    %c0_7 = arith.constant 0 : index
    %5 = vector.load %arg3[%c0_6, %c0_7] : memref<32x32xbf16, #tpu.memory_space<vmem>>, vector<32x32xbf16>
    %cst_8 = arith.constant dense<0.000000e+00> : vector<16x8x32xf32>
    %6 = tpu.matmul %0, %5, %cst_8 {dimension_numbers = #tpu.dot_dimension_numbers<[2], [1], [0, 1], [0], [0, 0, 0, 1, 1, 0], [], []>} : vector<16x8x32xbf16>, vector<32x32xbf16>, vector<16x8x32xf32> -> vector<16x8x32xf32>
    %7 = arith.truncf %6 : vector<16x8x32xf32> to vector<16x8x32xbf16>
    %cst_9 = arith.constant 5.000000e-01 : f32
    %8 = vector.broadcast %cst_9 : f32 to vector<16x8xf32>
    %9 = arith.cmpf ogt, %1, %8 : vector<16x8xf32>
    %cst_10 = arith.constant -1.000000e+09 : f32
    %cst_11 = arith.constant 0.000000e+00 : f32
    %10 = vector.broadcast %cst_10 : f32 to vector<16x8xf32>
    %11 = vector.broadcast %cst_11 : f32 to vector<16x8xf32>
    %12 = arith.select %9, %10, %11 : vector<16x8xi1>, vector<16x8xf32>
    %cst_12 = arith.constant 1.000000e+00 : f32
    %13 = vector.broadcast %cst_12 : f32 to vector<16x8xf32>
    %14 = arith.subf %13, %1 : vector<16x8xf32>
    %cst_13 = arith.constant dense<0.000000e+00> : vector<16xf32>
    %15 = vector.multi_reduction <add>, %14, %cst_13 [1] : vector<16x8xf32> to vector<16xf32>
    %16 = vector.shape_cast %15 : vector<16xf32> to vector<16x1xf32>
    "tpu.trace_start"() <{level = 10 : i32, message = "bqe,bke->bqk"}> : () -> ()
    %cst_14 = arith.constant dense<0.000000e+00> : vector<16x8x8xf32>
    %17 = tpu.matmul %4, %7, %cst_14 {dimension_numbers = #tpu.dot_dimension_numbers<[2], [2], [1], [1], [0, 0, 0, 1, 1, 1], [0], [0]>} : vector<16x8x32xbf16>, vector<16x8x32xbf16>, vector<16x8x8xf32> -> vector<16x8x8xf32>
    "tpu.trace_stop"() : () -> ()
    %18 = vector.shape_cast %12 : vector<16x8xf32> to vector<16x1x8xf32>
    %19 = vector.broadcast %18 : vector<16x1x8xf32> to vector<16x8x8xf32>
    %20 = arith.addf %17, %19 : vector<16x8x8xf32>
    %cst_15 = arith.constant dense<0xFF800000> : vector<16x8xf32>
    %21 = vector.multi_reduction <maximumf>, %20, %cst_15 [2] : vector<16x8x8xf32> to vector<16x8xf32>
    %22 = vector.shape_cast %21 : vector<16x8xf32> to vector<16x8x1xf32>
    %23 = vector.broadcast %22 : vector<16x8x1xf32> to vector<16x8x8xf32>
    %24 = arith.subf %20, %23 : vector<16x8x8xf32>
    %25 = math.exp %24 : vector<16x8x8xf32>
    %cst_16 = arith.constant dense<0.000000e+00> : vector<16x8xf32>
    %26 = vector.multi_reduction <add>, %25, %cst_16 [2] : vector<16x8x8xf32> to vector<16x8xf32>
    %27 = vector.shape_cast %26 : vector<16x8xf32> to vector<16x8x1xf32>
    %28 = vector.shape_cast %14 : vector<16x8xf32> to vector<16x8x1xf32>
    %29 = tpu.reciprocal %27 {approx = true} : vector<16x8x1xf32> -> vector<16x8x1xf32>
    %30 = arith.mulf %28, %29 : vector<16x8x1xf32>
    %31 = vector.broadcast %30 : vector<16x8x1xf32> to vector<16x8x8xf32>
    %32 = arith.mulf %25, %31 : vector<16x8x8xf32>
    %cst_17 = arith.constant dense<0.000000e+00> : vector<16x8xf32>
    %33 = vector.multi_reduction <add>, %32, %cst_17 [1] : vector<16x8x8xf32> to vector<16x8xf32>
    %34 = vector.shape_cast %33 : vector<16x8xf32> to vector<16x1x8xf32>
    %35 = arith.truncf %34 : vector<16x1x8xf32> to vector<16x1x8xbf16>
    "tpu.trace_start"() <{level = 10 : i32, message = "bqk,bkd->bqd"}> : () -> ()
    %cst_18 = arith.constant dense<0.000000e+00> : vector<16x1x32xf32>
    %36 = tpu.matmul %35, %0, %cst_18 {dimension_numbers = #tpu.dot_dimension_numbers<[2], [1], [1], [2], [0, 0, 0, 1, 1, 2], [0], [0]>} : vector<16x1x8xbf16>, vector<16x8x32xbf16>, vector<16x1x32xf32> -> vector<16x1x32xf32>
    "tpu.trace_stop"() : () -> ()
    %37 = vector.shape_cast %36 : vector<16x1x32xf32> to vector<16x32xf32>
    %cst_19 = arith.constant 9.99999971E-10 : f32
    %38 = vector.broadcast %cst_19 : f32 to vector<16x1xf32>
    %39 = arith.addf %16, %38 : vector<16x1xf32>
    %40 = vector.broadcast %39 : vector<16x1xf32> to vector<16x32xf32>
    %41 = arith.divf %37, %40 : vector<16x32xf32>
    %c0_20 = arith.constant 0 : index
    %c0_21 = arith.constant 0 : index
    %42 = memref.load %arg1[%c0_20, %c0_21] : memref<1x1xf32, #tpu.memory_space<smem>>
    %43 = vector.broadcast %42 : f32 to vector<16x32xf32>
    %44 = arith.mulf %43, %41 : vector<16x32xf32>
    %cst_22 = arith.constant 1.000000e+00 : f32
    %45 = arith.subf %cst_22, %42 : f32
    %c0_23 = arith.constant 0 : index
    %c0_24 = arith.constant 0 : index
    %46 = vector.load %arg6[%c0_23, %c0_24] : memref<16x32xf32, #tpu.memory_space<vmem>>, vector<16x32xf32>
    %47 = vector.broadcast %45 : f32 to vector<16x32xf32>
    %48 = arith.mulf %47, %46 : vector<16x32xf32>
    %49 = arith.addf %44, %48 : vector<16x32xf32>
    %c0_25 = arith.constant 0 : index
    %c0_26 = arith.constant 0 : index
    %50 = vector.load %arg7[%c0_25, %c0_26] : memref<16x32xf32, #tpu.memory_space<vmem>>, vector<16x32xf32>
    tpu.vector_store %arg7[%c0_25, %c0_26], %49 {strides = array<i32>} : memref<16x32xf32, #tpu.memory_space<vmem>>, vector<16x32xf32>,
    return
  }
  func.func @transform_0(%arg0: i32) -> (i32, i32) {
    %c0_i32 = arith.constant 0 : i32
    %c0_i32_0 = arith.constant 0 : i32
    %c0_i32_1 = arith.constant 0 : i32
    return %c0_i32, %c0_i32_0 : i32, i32
  }
  func.func @transform_1(%arg0: i32) -> (i32, i32) {
    %c0_i32 = arith.constant 0 : i32
    %c0_i32_0 = arith.constant 0 : i32
    %c0_i32_1 = arith.constant 0 : i32
    return %c0_i32, %c0_i32_0 : i32, i32
  }
  func.func @transform_2(%arg0: i32) -> (i32, i32) {
    %c0_i32 = arith.constant 0 : i32
    %c0_i32_0 = arith.constant 0 : i32
    %c0_i32_1 = arith.constant 0 : i32
    return %c0_i32, %c0_i32_0 : i32, i32
  }
  func.func @transform_3(%arg0: i32) -> (i32, i32, i32) {
    %c0_i32 = arith.constant 0 : i32
    %c0_i32_0 = arith.constant 0 : i32
    %c0_i32_1 = arith.constant 0 : i32
    return %arg0, %c0_i32, %c0_i32_0 : i32, i32, i32
  }
  func.func @transform_4(%arg0: i32) -> (i32, i32) {
    %c0_i32 = arith.constant 0 : i32
    %c0_i32_0 = arith.constant 0 : i32
    return %arg0, %c0_i32 : i32, i32
  }
  func.func @transform_5(%arg0: i32) -> (i32, i32) {
    %c0_i32 = arith.constant 0 : i32
    %c0_i32_0 = arith.constant 0 : i32
    return %arg0, %c0_i32 : i32, i32
  }
  func.func @transform_6(%arg0: i32) -> (i32, i32) {
    %c0_i32 = arith.constant 0 : i32
    %c0_i32_0 = arith.constant 0 : i32
    return %arg0, %c0_i32 : i32, i32
  }
}

</mosaic_0001>

<llo_original>
// kernel: tpu_custom_call.1
$region0: #{tpu_custom_call.1}
  #allocation0 [shape = 'u32[]', space=smem, size = 0x4, offset = 0x4, fixed_abs, tag = 'smem constant byte address 0x4 - core index']
  #allocation1 [shape = 'u32[144,128]{1,0:T(1,128)}', space=vmem, size = 0x12000, scoped, tag = 'internal scratch']
  #allocation2 [shape = 'f32[1,1]{1,0:T(1,128)S(6)}', space=smem, size = 0x200, scoped, tag = 'scoped memory for tpu_custom_call.1']
  %s0 = inlined_call_operand.<no memory space> [shape: f32[1,1], index: 0, kind: input, shape index: {}]
  %s1 = inlined_call_operand.vmem [shape: bf16[32,32], index: 1, kind: input, shape index: {}]
  %s2 = inlined_call_operand.hbm [shape: bf16[32,32], index: 2, kind: input, shape index: {}]
  %s3 = inlined_call_operand.hbm [shape: bf16[32,8,32], index: 3, kind: input, shape index: {}]
  %s4 = inlined_call_operand.vmem [shape: f32[32,8], index: 4, kind: input, shape index: {}]
  %s5 = inlined_call_operand.vmem [shape: f32[32,32], index: 5, kind: input, shape index: {}]
  %s6 = inlined_call_operand.hbm [shape: f32[32,32], index: 6, kind: output, shape index: {}]
  %s7 = sld [smem:[#allocation0]]
  $region65: #{tpu_custom_call.1} parent=0
    _
  %s9 = ssub.s32 1, %s7
  %s10 = scalar_select 0, %s9, %s7
  %11 = sst [smem:[#allocation2]] %s0
  $region1: #{tpu_custom_call.1} parent=0
    #allocation3 [shape = 'u8[8192]{0}', space=vmem, size = 0x2000, scoped, tag = 'input window, operand 2, single buffered']
    #allocation4 [shape = 's32[2]{0}', space=sflag, size = 0x8, scoped, tag = 'scoped memory for tpu_custom_call.1']
    #allocation5 [shape = 's32[2]{0}', space=sflag, size = 0x8, scoped, tag = 'scoped memory for tpu_custom_call.1']
    #allocation6 [shape = 'u8[65536]{0}', space=vmem, size = 0x10000, scoped, tag = 'input window, operand 3']
    #allocation7 [shape = 's32[2]{0}', space=sflag, size = 0x8, scoped, tag = 'scoped memory for tpu_custom_call.1']
    #allocation8 [shape = 'u8[16384]{0}', space=vmem, size = 0x4000, scoped, tag = 'output window, operand 0']
    %12 = vsyncpa [#allocation4], 0
    %13 = vsyncpa [#allocation7], 0
    %s14 = scalar_lea.sflag [#allocation7], 1
    %15 = vsyncpa %s14, 0
    %16 = vsyncpa [#allocation5], 0
    %s17 = scalar_lea.sflag [#allocation5], 1
    %18 = vsyncpa %s17, 0
    loop: start=0, step=1, limit=4
    $region2: #{tpu_custom_call.1} parent=1 // loop_pre_header
      _
    $region3: #{tpu_custom_call.1} parent=1 // loop_header
      %s20 = sphi 0, %s24
      %p21 = scmp.ge.s32.totalorder %s20, 4
      %s28 = sphi 0, %s28
      %s30 = sphi 0, %s28
      %s31 = sphi 0, %s30
      %s45 = sphi 0, %s31
      %s49 = sphi 0, %s49
      %s51 = sphi 0, %s49
      %s52 = sphi 0, %s51
      %s66 = sphi 0, %s52
      %s70 = sphi 0, %s70
      %s72 = sphi 0, %s70
      %s73 = sphi 0, %s72
      %s87 = sphi 0, %s73
      %s93 = sphi 0, %s95
      %s96 = sphi 0, %s93
      %s97 = sphi 0, %s96
      %s113 = sphi 0, %s97
      %s119 = sphi 0, %s121
      %s122 = sphi 0, %s119
      %s123 = sphi 0, %s122
      %s139 = sphi 0, %s123
      %s145 = sphi 0, %s147
      %s148 = sphi 0, %s145
      %s149 = sphi 0, %s148
      %s165 = sphi 0, %s149
      %s171 = sphi 0, %s173
      %s174 = sphi 0, %s171
      %s175 = sphi 0, %s174
      %s191 = sphi 0, %s175
    $region4: #{tpu_custom_call.1} parent=1 // loop_header_branch
      %23 = sbr.rel (%p21) target = $region8
    $region5: #{tpu_custom_call.1} parent=1 // loop_body
      %s25 = ssub.s32 %s20, 1
      %s26 = ssub.s32 %s20, 2
      %s27 = sadd.s32 %s20, 1
      %s29 = sadd.s32 %s28, 1
      %p32 = scmp.eq.s32.totalorder %s20, 1
      %p33 = scmp.ne.s32.totalorder %s28, %s30
      %p34 = scmp.eq.s32.totalorder %s20, 0
      %p35 = por %p33, %p34
      %p36 = scmp.ne.s32.totalorder %s28, %s30
      %p37 = scmp.eq.s32.totalorder %s25, 1
      %p38 = por %p36, %p37
      %p39 = scmp.ne.s32.totalorder %s30, %s31
      %p40 = scmp.eq.s32.totalorder %s25, 0
      %p41 = por %p39, %p40
      %p42 = scmp.ne.s32.totalorder %s30, %s31
      %p43 = scmp.eq.s32.totalorder %s26, 1
      %p44 = por %p42, %p43
      %p46 = scmp.ne.s32.totalorder %s31, %s45
      %p47 = scmp.eq.s32.totalorder %s26, 0
      %p48 = por %p46, %p47
      %s50 = sadd.s32 %s49, 1
      %p53 = scmp.eq.s32.totalorder %s20, 1
      %p54 = scmp.ne.s32.totalorder %s49, %s51
      %p55 = scmp.eq.s32.totalorder %s20, 0
      %p56 = por %p54, %p55
      %p57 = scmp.ne.s32.totalorder %s49, %s51
      %p58 = scmp.eq.s32.totalorder %s25, 1
      %p59 = por %p57, %p58
      %p60 = scmp.ne.s32.totalorder %s51, %s52
      %p61 = scmp.eq.s32.totalorder %s25, 0
      %p62 = por %p60, %p61
      %p63 = scmp.ne.s32.totalorder %s51, %s52
      %p64 = scmp.eq.s32.totalorder %s26, 1
      %p65 = por %p63, %p64
      %p67 = scmp.ne.s32.totalorder %s52, %s66
      %p68 = scmp.eq.s32.totalorder %s26, 0
      %p69 = por %p67, %p68
      %s71 = sadd.s32 %s70, 1
      %p74 = scmp.eq.s32.totalorder %s20, 1
      %p75 = scmp.ne.s32.totalorder %s70, %s72
      %p76 = scmp.eq.s32.totalorder %s20, 0
      %p77 = por %p75, %p76
      %p78 = scmp.ne.s32.totalorder %s70, %s72
      %p79 = scmp.eq.s32.totalorder %s25, 1
      %p80 = por %p78, %p79
      %p81 = scmp.ne.s32.totalorder %s72, %s73
      %p82 = scmp.eq.s32.totalorder %s25, 0
      %p83 = por %p81, %p82
      %p84 = scmp.ne.s32.totalorder %s72, %s73
      %p85 = scmp.eq.s32.totalorder %s26, 1
      %p86 = por %p84, %p85
      %p88 = scmp.ne.s32.totalorder %s73, %s87
      %p89 = scmp.eq.s32.totalorder %s26, 0
      %p90 = por %p88, %p89
      %s91 = ssub.s32 %s20, %s27
      %p92 = scmp.eq.s32.totalorder %s91, 0
      %s94 = sadd.s32 %s93, 1
      %s95 = scalar_select %p92, %s93, %s94
      %p98 = pneg %p92
      %p99 = scmp.eq.s32.totalorder %s20, 1
      %p100 = por %p98, %p99
      %p101 = scmp.ne.s32.totalorder %s93, %s96
      %p102 = scmp.eq.s32.totalorder %s20, 0
      %p103 = por %p101, %p102
      %p104 = scmp.ne.s32.totalorder %s93, %s96
      %p105 = scmp.eq.s32.totalorder %s25, 1
      %p106 = por %p104, %p105
      %p107 = scmp.ne.s32.totalorder %s96, %s97
      %p108 = scmp.eq.s32.totalorder %s25, 0
      %p109 = por %p107, %p108
      %p110 = scmp.ne.s32.totalorder %s96, %s97
      %p111 = scmp.eq.s32.totalorder %s26, 1
      %p112 = por %p110, %p111
      %p114 = scmp.ne.s32.totalorder %s97, %s113
      %p115 = scmp.eq.s32.totalorder %s26, 0
      %p116 = por %p114, %p115
      %s117 = ssub.s32 %s20, %s27
      %p118 = scmp.eq.s32.totalorder %s117, 0
      %s120 = sadd.s32 %s119, 1
      %s121 = scalar_select %p118, %s119, %s120
      %p124 = pneg %p118
      %p125 = scmp.eq.s32.totalorder %s20, 1
      %p126 = por %p124, %p125
      %p127 = scmp.ne.s32.totalorder %s119, %s122
      %p128 = scmp.eq.s32.totalorder %s20, 0
      %p129 = por %p127, %p128
      %p130 = scmp.ne.s32.totalorder %s119, %s122
      %p131 = scmp.eq.s32.totalorder %s25, 1
      %p132 = por %p130, %p131
      %p133 = scmp.ne.s32.totalorder %s122, %s123
      %p134 = scmp.eq.s32.totalorder %s25, 0
      %p135 = por %p133, %p134
      %p136 = scmp.ne.s32.totalorder %s122, %s123
      %p137 = scmp.eq.s32.totalorder %s26, 1
      %p138 = por %p136, %p137
      %p140 = scmp.ne.s32.totalorder %s123, %s139
      %p141 = scmp.eq.s32.totalorder %s26, 0
      %p142 = por %p140, %p141
      %s143 = ssub.s32 %s20, %s27
      %p144 = scmp.eq.s32.totalorder %s143, 0
      %s146 = sadd.s32 %s145, 1
      %s147 = scalar_select %p144, %s145, %s146
      %p150 = pneg %p144
      %p151 = scmp.eq.s32.totalorder %s20, 1
      %p152 = por %p150, %p151
      %p153 = scmp.ne.s32.totalorder %s145, %s148
      %p154 = scmp.eq.s32.totalorder %s20, 0
      %p155 = por %p153, %p154
      %p156 = scmp.ne.s32.totalorder %s145, %s148
      %p157 = scmp.eq.s32.totalorder %s25, 1
      %p158 = por %p156, %p157
      %p159 = scmp.ne.s32.totalorder %s148, %s149
      %p160 = scmp.eq.s32.totalorder %s25, 0
      %p161 = por %p159, %p160
      %p162 = scmp.ne.s32.totalorder %s148, %s149
      %p163 = scmp.eq.s32.totalorder %s26, 1
      %p164 = por %p162, %p163
      %p166 = scmp.ne.s32.totalorder %s149, %s165
      %p167 = scmp.eq.s32.totalorder %s26, 0
      %p168 = por %p166, %p167
      %s169 = ssub.s32 %s20, %s27
      %p170 = scmp.eq.s32.totalorder %s169, 0
      %s172 = sadd.s32 %s171, 1
      %s173 = scalar_select %p170, %s171, %s172
      %p176 = pneg %p170
      %p177 = scmp.eq.s32.totalorder %s20, 1
      %p178 = por %p176, %p177
      %p179 = scmp.ne.s32.totalorder %s171, %s174
      %p180 = scmp.eq.s32.totalorder %s20, 0
      %p181 = por %p179, %p180
      %p182 = scmp.ne.s32.totalorder %s171, %s174
      %p183 = scmp.eq.s32.totalorder %s25, 1
      %p184 = por %p182, %p183
      %p185 = scmp.ne.s32.totalorder %s174, %s175
      %p186 = scmp.eq.s32.totalorder %s25, 0
      %p187 = por %p185, %p186
      %p188 = scmp.ne.s32.totalorder %s174, %s175
      %p189 = scmp.eq.s32.totalorder %s26, 1
      %p190 = por %p188, %p189
      %p192 = scmp.ne.s32.totalorder %s175, %s191
      %p193 = scmp.eq.s32.totalorder %s26, 0
      %p194 = por %p192, %p193
      %p195 = scmp.le.s32.totalorder 1, %s20
      %p196 = scmp.lt.s32.totalorder %s20, 3
      %p197 = pnand %p195, %p196
      %p198 = pneg %p197
      // Predicated region
      $region9: #{tpu_custom_call.1} parent=5 // pred_check
        _
      $region10: #{tpu_custom_call.1} parent=5 // pred_check_branch
        %200 = sbr.rel (%p197) target = $region12
      $region11: #{tpu_custom_call.1} parent=5 // pred_region
        %s201 = ssub.s32 %s20, 1
        // Predicated region
        $region13: #{tpu_custom_call.1} parent=11 // pred_check
          %p202 = pneg %p41
        $region14: #{tpu_custom_call.1} parent=11 // pred_check_branch
          %204 = sbr.rel (%p202) target = $region16
        $region15: #{tpu_custom_call.1} parent=11 // pred_region
          _
        $region16: #{tpu_custom_call.1} parent=11 // pred_fallthru
          _
        // Predicated region
        $region17: #{tpu_custom_call.1} parent=11 // pred_check
          %p205 = pneg %p62
        $region18: #{tpu_custom_call.1} parent=11 // pred_check_branch
          %207 = sbr.rel (%p205) target = $region20
        $region19: #{tpu_custom_call.1} parent=11 // pred_region
          _
        $region20: #{tpu_custom_call.1} parent=11 // pred_fallthru
          _
        // Predicated region
        $region21: #{tpu_custom_call.1} parent=11 // pred_check
          %p208 = pneg %p83
        $region22: #{tpu_custom_call.1} parent=11 // pred_check_branch
          %210 = sbr.rel (%p208) target = $region24
        $region23: #{tpu_custom_call.1} parent=11 // pred_region
          %s212 = ssub.s32 256, 256
          %213 = vsyncadd [#allocation4], %s212
          %s214 = sshll.u32 [#allocation3], 4
          %s215 = int_to_ptr.vmem [resolvable:$true] %s214
          %220 = dma.hbm_to_vmem [thread:$0]  %s2, 256, %s215, [#allocation4], 64, 64, 4
        $region24: #{tpu_custom_call.1} parent=11 // pred_fallthru
          _
      $region12: #{tpu_custom_call.1} parent=5 // pred_fallthru
        _
      %p221 = scmp.lt.s32.totalorder %s20, 2
      // Predicated region
      $region25: #{tpu_custom_call.1} parent=5 // pred_check
        %p222 = pneg %p221
      $region26: #{tpu_custom_call.1} parent=5 // pred_check_branch
        %224 = sbr.rel (%p222) target = $region28
      $region27: #{tpu_custom_call.1} parent=5 // pred_region
        // Predicated region
        $region29: #{tpu_custom_call.1} parent=27 // pred_check
          %p225 = pneg %p103
        $region30: #{tpu_custom_call.1} parent=27 // pred_check_branch
          %227 = sbr.rel (%p225) target = $region32
        $region31: #{tpu_custom_call.1} parent=27 // pred_region
          %s228 = sand.u32 %s93, 1
          %s229 = scalar_lea.sflag [#allocation7], %s228
          %s230 = sand.u32 %s93, 1
          %s231 = smul.addr %s230, 64
          %s232 = scalar_lea.vmem [#allocation6], %s231
          %s233 = smul.u32 16, %s20
          %s235 = ssub.s32 1024, 1024
          %236 = vsyncadd %s229, %s235
          %s237 = smul.addr %s233, 64
          %s238 = scalar_lea.hbm %s3, %s237
          %s239 = sshll.u32 %s232, 4
          %s240 = int_to_ptr.vmem [resolvable:$true] %s239
          %245 = dma.hbm_to_vmem [thread:$0]  %s238, 1024, %s240, %s229, 64, 64, 4
        $region32: #{tpu_custom_call.1} parent=27 // pred_fallthru
          _
        // Predicated region
        $region33: #{tpu_custom_call.1} parent=27 // pred_check
          %p246 = pneg %p129
        $region34: #{tpu_custom_call.1} parent=27 // pred_check_branch
          %248 = sbr.rel (%p246) target = $region36
        $region35: #{tpu_custom_call.1} parent=27 // pred_region
          %s249 = smul.u32 2, %s20
          %p250 = scmp.lt.s32.totalorder %s249, 3
          %s251 = scalar_select %p250, %s249, 3
          %s252 = smul.addr %s251, 8
          %s253 = scalar_lea.vmem %s4, %s252
          %s254 = smul.u32 2, %s20
        $region36: #{tpu_custom_call.1} parent=27 // pred_fallthru
          _
        // Predicated region
        $region37: #{tpu_custom_call.1} parent=27 // pred_check
          %p255 = pneg %p155
        $region38: #{tpu_custom_call.1} parent=27 // pred_check_branch
          %257 = sbr.rel (%p255) target = $region40
        $region39: #{tpu_custom_call.1} parent=27 // pred_region
          %s258 = smul.u32 2, %s20
          %p259 = scmp.lt.s32.totalorder %s258, 3
          %s260 = scalar_select %p259, %s258, 3
          %s261 = smul.addr %s260, 8
          %s262 = scalar_lea.vmem %s5, %s261
          %s263 = smul.u32 2, %s20
        $region40: #{tpu_custom_call.1} parent=27 // pred_fallthru
          _
      $region28: #{tpu_custom_call.1} parent=5 // pred_fallthru
        _
      %p264 = scmp.le.s32.totalorder 1, %s20
      %p265 = scmp.lt.s32.totalorder %s20, 3
      %p266 = pnand %p264, %p265
      %p267 = pneg %p266
      // Predicated region
      $region41: #{tpu_custom_call.1} parent=5 // pred_check
        _
      $region42: #{tpu_custom_call.1} parent=5 // pred_check_branch
        %269 = sbr.rel (%p266) target = $region44
      $region43: #{tpu_custom_call.1} parent=5 // pred_region
        %s270 = ssub.s32 %s20, 1
        // Predicated region
        $region45: #{tpu_custom_call.1} parent=43 // pred_check
          %p271 = pneg %p83
        $region46: #{tpu_custom_call.1} parent=43 // pred_check_branch
          %273 = sbr.rel (%p271) target = $region48
        $region47: #{tpu_custom_call.1} parent=43 // pred_region
          %274 = dma.done [#allocation4], 256
        $region48: #{tpu_custom_call.1} parent=43 // pred_fallthru
          _
        %s275 = sand.u32 %s96, 1
        %s276 = scalar_lea.sflag [#allocation7], %s275
        %s277 = sand.u32 %s96, 1
        %s278 = smul.addr %s277, 64
        %s279 = scalar_lea.vmem [#allocation6], %s278
        // Predicated region
        $region49: #{tpu_custom_call.1} parent=43 // pred_check
          %p280 = pneg %p109
        $region50: #{tpu_custom_call.1} parent=43 // pred_check_branch
          %282 = sbr.rel (%p280) target = $region52
        $region51: #{tpu_custom_call.1} parent=43 // pred_region
          %283 = dma.done %s276, 1024
        $region52: #{tpu_custom_call.1} parent=43 // pred_fallthru
          _
        %p284 = pneg %p41
        %p285 = pneg %p38
        %p286 = pneg %p62
        %p287 = pneg %p59
        %p288 = pneg %p83
        %p289 = pneg %p80
        %s290 = sand.u32 %s96, 1
        %s291 = scalar_lea.sflag [#allocation7], %s290
        %s292 = sand.u32 %s96, 1
        %s293 = smul.addr %s292, 64
        %s294 = scalar_lea.vmem [#allocation6], %s293
        %p295 = pneg %p109
        %p296 = pneg %p106
        %s297 = smul.u32 2, %s25
        %p298 = scmp.lt.s32.totalorder %s297, 3
        %s299 = scalar_select %p298, %s297, 3
        %s300 = smul.addr %s299, 8
        %s301 = scalar_lea.vmem %s4, %s300
        %p302 = pneg %p135
        %p303 = pneg %p132
        %s304 = smul.u32 2, %s25
        %p305 = scmp.lt.s32.totalorder %s304, 3
        %s306 = scalar_select %p305, %s304, 3
        %s307 = smul.addr %s306, 8
        %s308 = scalar_lea.vmem %s5, %s307
        %p309 = pneg %p161
        %p310 = pneg %p158
        %p311 = pneg %p187
        %p312 = pneg %p184
        %s313 = sand.u32 %s174, 1
        %s314 = scalar_lea.sflag [#allocation5], %s313
        %s315 = sand.u32 %s174, 1
        %s316 = smul.addr %s315, 16
        %s317 = scalar_lea.vmem [#allocation8], %s316
        %s318 = smul.u32 16, %s25
        %s319 = smul.u32 2, %s25
        %p320 = scmp.lt.s32.totalorder %s319, 3
        %s321 = scalar_select %p320, %s319, 3
        %s322 = smul.addr %s321, 8
        %s323 = scalar_lea.vmem %s4, %s322
        %s324 = smul.u32 2, %s25
        %s325 = smul.u32 2, %s25
        %p326 = scmp.lt.s32.totalorder %s325, 3
        %s327 = scalar_select %p326, %s325, 3
        %s328 = smul.addr %s327, 8
        %s329 = scalar_lea.vmem %s5, %s328
        %s330 = smul.u32 2, %s25
        %s331 = smul.u32 2, %s25
        %v333 = vld [vmem:[%s279] sm:$0xf]
        %v334 = vld [vmem:[%s279 + $0x4] sm:$0xf]
        %v335 = vld [vmem:[%s279 + $0x8] sm:$0xf]
        %v336 = vld [vmem:[%s279 + $0xc] sm:$0xf]
        %v337 = vld [vmem:[%s279 + $0x10] sm:$0xf]
        %v338 = vld [vmem:[%s279 + $0x14] sm:$0xf]
        %v339 = vld [vmem:[%s279 + $0x18] sm:$0xf]
        %v340 = vld [vmem:[%s279 + $0x1c] sm:$0xf]
        %v341 = vld [vmem:[%s279 + $0x20] sm:$0xf]
        %v342 = vld [vmem:[%s279 + $0x24] sm:$0xf]
        %v343 = vld [vmem:[%s279 + $0x28] sm:$0xf]
        %v344 = vld [vmem:[%s279 + $0x2c] sm:$0xf]
        %v345 = vld [vmem:[%s279 + $0x30] sm:$0xf]
        %v346 = vld [vmem:[%s279 + $0x34] sm:$0xf]
        %v347 = vld [vmem:[%s279 + $0x38] sm:$0xf]
        %v348 = vld [vmem:[%s279 + $0x3c] sm:$0xf]
        %v349 = vld [vmem:[%s323] sm:$0xff]
        %v350 = vld [vmem:[%s323 + $0x8] sm:$0xff]
        %v351 = vld [vmem:[%s1] sm:$0xf]
        %v352 = vld [vmem:[%s1 + $0x4] sm:$0xf]
        %v353 = vld [vmem:[%s1 + $0x8] sm:$0xf]
        %v354 = vld [vmem:[%s1 + $0xc] sm:$0xf]
        %v371 = vunpack.c.l.b16 %v333
        %v372 = vunpack.c.l.b16 %v334
        %v373 = vunpack.c.l.b16 %v335
        %v374 = vunpack.c.l.b16 %v336
        %v375 = vunpack.c.l.b16 %v337
        %v376 = vunpack.c.l.b16 %v338
        %v377 = vunpack.c.l.b16 %v339
        %v378 = vunpack.c.l.b16 %v340
        %v379 = vunpack.c.l.b16 %v341
        %v380 = vunpack.c.l.b16 %v342
        %v381 = vunpack.c.l.b16 %v343
        %v382 = vunpack.c.l.b16 %v344
        %v383 = vunpack.c.l.b16 %v345
        %v384 = vunpack.c.l.b16 %v346
        %v385 = vunpack.c.l.b16 %v347
        %v386 = vunpack.c.l.b16 %v348
        %v387 = vpack.c.b16 %v372, %v371
        %v388 = vpack.c.b16 %v374, %v373
        %v389 = vpack.c.b16 %v376, %v375
        %v390 = vpack.c.b16 %v378, %v377
        %v391 = vpack.c.b16 %v380, %v379
        %v392 = vpack.c.b16 %v382, %v381
        %v393 = vpack.c.b16 %v384, %v383
        %v394 = vpack.c.b16 %v386, %v385
        %v399 = vunpack.c.l.b16 %v351
        %v400 = vunpack.c.l.b16 %v352
        %v401 = vunpack.c.l.b16 %v353
        %v402 = vunpack.c.l.b16 %v354
        %v403 = vpack.c.b16 %v400, %v399
        %v404 = vpack.c.b16 %v402, %v401
        %vm405 = vcmask 261120
        %v407 = vsel %vm405, %v387, 0
        %v410 = vsel %vm405, %v388, 0
        %v413 = vsel %vm405, %v389, 0
        %v416 = vsel %vm405, %v390, 0
        %v419 = vsel %vm405, %v391, 0
        %v422 = vsel %vm405, %v392, 0
        %v425 = vsel %vm405, %v393, 0
        %v428 = vsel %vm405, %v394, 0
        %v431 = vsel %vm405, %v403, 0
        %v434 = vsel %vm405, %v404, 0
        %436 = vmatprep.subr.bf16.mxu0 0
        %437 = vmatpush1.bf16.xpose.msra.mxu0 0
        %438 = vmatprep.subr.bf16.mxu0 0
        %439 = vmatpush1.bf16.xpose.msra.mxu0 0
        %440 = vmatprep.subr.bf16.mxu0 0
        %441 = vmatpush1.bf16.xpose.msra.mxu0 0
        %442 = vmatprep.subr.bf16.mxu0 0
        %443 = vmatpush1.bf16.xpose.msra.mxu0 0
        %444 = vmatprep.subr.bf16.mxu0 0
        %445 = vmatpush1.bf16.xpose.msra.mxu0 0
        %446 = vmatprep.subr.bf16.mxu0 0
        %447 = vmatpush1.bf16.xpose.msra.mxu0 0
        %448 = vmatprep.subr.bf16.mxu0 0
        %449 = vmatpush1.bf16.xpose.msra.mxu0 %v434
        %450 = vmatprep.subr.bf16.mxu0 0
        %451 = vmatpush1.bf16.xpose.msra.mxu0 %v431
        %452 = vmatprep.subr.bf16.mxu0 0
        %453 = vmatpush2.bf16.xpose.msra.mxu0 0
        %454 = vmatprep.subr.bf16.mxu0 0
        %455 = vmatpush2.bf16.xpose.msra.mxu0 0
        %456 = vmatprep.subr.bf16.mxu0 0
        %457 = vmatpush2.bf16.xpose.msra.mxu0 0
        %458 = vmatprep.subr.bf16.mxu0 0
        %459 = vmatpush2.bf16.xpose.msra.mxu0 0
        %460 = vmatprep.subr.bf16.mxu0 0
        %461 = vmatpush2.bf16.xpose.msra.mxu0 0
        %462 = vmatprep.subr.bf16.mxu0 0
        %463 = vmatpush2.bf16.xpose.msra.mxu0 0
        %464 = vmatprep.subr.bf16.mxu0 0
        %465 = vmatpush2.bf16.xpose.msra.mxu0 0
        %466 = vmatprep.subr.bf16.mxu0 0
        %467 = vmatpush2.bf16.xpose.msra.mxu0 0
        %468 = vmatprep.mubr.bf16.mxu0 0
        %469 = vmatmul.mubr.bf16.gmra.mxu0 %v407
        %v470 = vpop.f32.mrf.mxu0
        %v471 = vadd.f32 0.0, %v470
        %v472 = vpop.f32.mrf.mxu0
        %v473 = vpop.f32.mrf.mxu0
        %v474 = vadd.f32 0.0, %v473
        %v475 = vpop.f32.mrf.mxu0
        %476 = vmatprep.mubr.bf16.mxu0 0
        %477 = vmatmul.mubr.bf16.gmra.mxu0 %v410
        %v478 = vpop.f32.mrf.mxu0
        %v479 = vadd.f32 0.0, %v478
        %v480 = vpop.f32.mrf.mxu0
        %v481 = vpop.f32.mrf.mxu0
        %v482 = vadd.f32 0.0, %v481
        %v483 = vpop.f32.mrf.mxu0
        %484 = vmatprep.mubr.bf16.mxu0 0
        %485 = vmatmul.mubr.bf16.gmra.mxu0 %v413
        %v486 = vpop.f32.mrf.mxu0
        %v487 = vadd.f32 0.0, %v486
        %v488 = vpop.f32.mrf.mxu0
        %v489 = vpop.f32.mrf.mxu0
        %v490 = vadd.f32 0.0, %v489
        %v491 = vpop.f32.mrf.mxu0
        %492 = vmatprep.mubr.bf16.mxu0 0
        %493 = vmatmul.mubr.bf16.gmra.mxu0 %v416
        %v494 = vpop.f32.mrf.mxu0
        %v495 = vadd.f32 0.0, %v494
        %v496 = vpop.f32.mrf.mxu0
        %v497 = vpop.f32.mrf.mxu0
        %v498 = vadd.f32 0.0, %v497
        %v499 = vpop.f32.mrf.mxu0
        %500 = vmatprep.mubr.bf16.mxu0 0
        %501 = vmatmul.mubr.bf16.gmra.mxu0 %v419
        %v502 = vpop.f32.mrf.mxu0
        %v503 = vadd.f32 0.0, %v502
        %v504 = vpop.f32.mrf.mxu0
        %v505 = vpop.f32.mrf.mxu0
        %v506 = vadd.f32 0.0, %v505
        %v507 = vpop.f32.mrf.mxu0
        %508 = vmatprep.mubr.bf16.mxu0 0
        %509 = vmatmul.mubr.bf16.gmra.mxu0 %v422
        %v510 = vpop.f32.mrf.mxu0
        %v511 = vadd.f32 0.0, %v510
        %v512 = vpop.f32.mrf.mxu0
        %v513 = vpop.f32.mrf.mxu0
        %v514 = vadd.f32 0.0, %v513
        %v515 = vpop.f32.mrf.mxu0
        %516 = vmatprep.mubr.bf16.mxu0 0
        %517 = vmatmul.mubr.bf16.gmra.mxu0 %v425
        %v518 = vpop.f32.mrf.mxu0
        %v519 = vadd.f32 0.0, %v518
        %v520 = vpop.f32.mrf.mxu0
        %v521 = vpop.f32.mrf.mxu0
        %v522 = vadd.f32 0.0, %v521
        %v523 = vpop.f32.mrf.mxu0
        %524 = vmatprep.mubr.bf16.mxu0 0
        %525 = vmatmul.mubr.bf16.gmra.mxu0 %v428
        %v526 = vpop.f32.mrf.mxu0
        %v527 = vadd.f32 0.0, %v526
        %v528 = vpop.f32.mrf.mxu0
        %v529 = vpop.f32.mrf.mxu0
        %v530 = vadd.f32 0.0, %v529
        %v531 = vpop.f32.mrf.mxu0
        %532 = vdwg.mxu0
        %v533 = vpack.c.bf16 %v471, %v471
        %v534 = vpack.c.bf16 %v474, %v474
        %v535 = vpack.c.bf16 %v479, %v479
        %v536 = vpack.c.bf16 %v482, %v482
        %v537 = vpack.c.bf16 %v487, %v487
        %v538 = vpack.c.bf16 %v490, %v490
        %v539 = vpack.c.bf16 %v495, %v495
        %v540 = vpack.c.bf16 %v498, %v498
        %v541 = vpack.c.bf16 %v503, %v503
        %v542 = vpack.c.bf16 %v506, %v506
        %v543 = vpack.c.bf16 %v511, %v511
        %v544 = vpack.c.bf16 %v514, %v514
        %v545 = vpack.c.bf16 %v519, %v519
        %v546 = vpack.c.bf16 %v522, %v522
        %v547 = vpack.c.bf16 %v527, %v527
        %v548 = vpack.c.bf16 %v530, %v530
        %v549 = vld [vmem:[#allocation3] sm:$0xf]
        %v550 = vld [vmem:[#allocation3 + $0x4] sm:$0xf]
        %v551 = vld [vmem:[#allocation3 + $0x8] sm:$0xf]
        %v552 = vld [vmem:[#allocation3 + $0xc] sm:$0xf]
        %v557 = vunpack.c.l.b16 %v549
        %v558 = vunpack.c.l.b16 %v550
        %v559 = vunpack.c.l.b16 %v551
        %v560 = vunpack.c.l.b16 %v552
        %v561 = vpack.c.b16 %v558, %v557
        %v562 = vpack.c.b16 %v560, %v559
        %v564 = vsel %vm405, %v561, 0
        %v567 = vsel %vm405, %v562, 0
        %569 = vmatprep.subr.bf16.mxu0 0
        %570 = vmatpush1.bf16.xpose.msra.mxu0 0
        %571 = vmatprep.subr.bf16.mxu0 0
        %572 = vmatpush1.bf16.xpose.msra.mxu0 0
        %573 = vmatprep.subr.bf16.mxu0 0
        %574 = vmatpush1.bf16.xpose.msra.mxu0 0
        %575 = vmatprep.subr.bf16.mxu0 0
        %576 = vmatpush1.bf16.xpose.msra.mxu0 0
        %577 = vmatprep.subr.bf16.mxu0 0
        %578 = vmatpush1.bf16.xpose.msra.mxu0 0
        %579 = vmatprep.subr.bf16.mxu0 0
        %580 = vmatpush1.bf16.xpose.msra.mxu0 0
        %581 = vmatprep.subr.bf16.mxu0 0
        %582 = vmatpush1.bf16.xpose.msra.mxu0 %v567
        %583 = vmatprep.subr.bf16.mxu0 0
        %584 = vmatpush1.bf16.xpose.msra.mxu0 %v564
        %585 = vmatprep.subr.bf16.mxu0 0
        %586 = vmatpush2.bf16.xpose.msra.mxu0 0
        %587 = vmatprep.subr.bf16.mxu0 0
        %588 = vmatpush2.bf16.xpose.msra.mxu0 0
        %589 = vmatprep.subr.bf16.mxu0 0
        %590 = vmatpush2.bf16.xpose.msra.mxu0 0
        %591 = vmatprep.subr.bf16.mxu0 0
        %592 = vmatpush2.bf16.xpose.msra.mxu0 0
        %593 = vmatprep.subr.bf16.mxu0 0
        %594 = vmatpush2.bf16.xpose.msra.mxu0 0
        %595 = vmatprep.subr.bf16.mxu0 0
        %596 = vmatpush2.bf16.xpose.msra.mxu0 0
        %597 = vmatprep.subr.bf16.mxu0 0
        %598 = vmatpush2.bf16.xpose.msra.mxu0 0
        %599 = vmatprep.subr.bf16.mxu0 0
        %600 = vmatpush2.bf16.xpose.msra.mxu0 0
        %601 = vmatprep.mubr.bf16.mxu0 0
        %602 = vmatmul.mubr.bf16.gmra.mxu0 %v407
        %v603 = vpop.f32.mrf.mxu0
        %v604 = vadd.f32 0.0, %v603
        %v605 = vpop.f32.mrf.mxu0
        %v606 = vpop.f32.mrf.mxu0
        %v607 = vadd.f32 0.0, %v606
        %v608 = vpop.f32.mrf.mxu0
        %609 = vmatprep.mubr.bf16.mxu0 0
        %610 = vmatmul.mubr.bf16.gmra.mxu0 %v410
        %v611 = vpop.f32.mrf.mxu0
        %v612 = vadd.f32 0.0, %v611
        %v613 = vpop.f32.mrf.mxu0
        %v614 = vpop.f32.mrf.mxu0
        %v615 = vadd.f32 0.0, %v614
        %v616 = vpop.f32.mrf.mxu0
        %617 = vmatprep.mubr.bf16.mxu0 0
        %618 = vmatmul.mubr.bf16.gmra.mxu0 %v413
        %v619 = vpop.f32.mrf.mxu0
        %v620 = vadd.f32 0.0, %v619
        %v621 = vpop.f32.mrf.mxu0
        %v622 = vpop.f32.mrf.mxu0
        %v623 = vadd.f32 0.0, %v622
        %v624 = vpop.f32.mrf.mxu0
        %625 = vmatprep.mubr.bf16.mxu0 0
        %626 = vmatmul.mubr.bf16.gmra.mxu0 %v416
        %v627 = vpop.f32.mrf.mxu0
        %v628 = vadd.f32 0.0, %v627
        %v629 = vpop.f32.mrf.mxu0
        %v630 = vpop.f32.mrf.mxu0
        %v631 = vadd.f32 0.0, %v630
        %v632 = vpop.f32.mrf.mxu0
        %633 = vmatprep.mubr.bf16.mxu0 0
        %634 = vmatmul.mubr.bf16.gmra.mxu0 %v419
        %v635 = vpop.f32.mrf.mxu0
        %v636 = vadd.f32 0.0, %v635
        %v637 = vpop.f32.mrf.mxu0
        %v638 = vpop.f32.mrf.mxu0
        %v639 = vadd.f32 0.0, %v638
        %v640 = vpop.f32.mrf.mxu0
        %641 = vmatprep.mubr.bf16.mxu0 0
        %642 = vmatmul.mubr.bf16.gmra.mxu0 %v422
        %v643 = vpop.f32.mrf.mxu0
        %v644 = vadd.f32 0.0, %v643
        %v645 = vpop.f32.mrf.mxu0
        %v646 = vpop.f32.mrf.mxu0
        %v647 = vadd.f32 0.0, %v646
        %v648 = vpop.f32.mrf.mxu0
        %649 = vmatprep.mubr.bf16.mxu0 0
        %650 = vmatmul.mubr.bf16.gmra.mxu0 %v425
        %v651 = vpop.f32.mrf.mxu0
        %v652 = vadd.f32 0.0, %v651
        %v653 = vpop.f32.mrf.mxu0
        %v654 = vpop.f32.mrf.mxu0
        %v655 = vadd.f32 0.0, %v654
        %v656 = vpop.f32.mrf.mxu0
        %657 = vmatprep.mubr.bf16.mxu0 0
        %658 = vmatmul.mubr.bf16.gmra.mxu0 %v428
        %v659 = vpop.f32.mrf.mxu0
        %v660 = vadd.f32 0.0, %v659
        %v661 = vpop.f32.mrf.mxu0
        %v662 = vpop.f32.mrf.mxu0
        %v663 = vadd.f32 0.0, %v662
        %v664 = vpop.f32.mrf.mxu0
        %665 = vdwg.mxu0
        %v666 = vpack.c.bf16 %v604, %v604
        %v667 = vpack.c.bf16 %v607, %v607
        %v668 = vpack.c.bf16 %v612, %v612
        %v669 = vpack.c.bf16 %v615, %v615
        %v670 = vpack.c.bf16 %v620, %v620
        %v671 = vpack.c.bf16 %v623, %v623
        %v672 = vpack.c.bf16 %v628, %v628
        %v673 = vpack.c.bf16 %v631, %v631
        %v674 = vpack.c.bf16 %v636, %v636
        %v675 = vpack.c.bf16 %v639, %v639
        %v676 = vpack.c.bf16 %v644, %v644
        %v677 = vpack.c.bf16 %v647, %v647
        %v678 = vpack.c.bf16 %v652, %v652
        %v679 = vpack.c.bf16 %v655, %v655
        %v680 = vpack.c.bf16 %v660, %v660
        %v681 = vpack.c.bf16 %v663, %v663
        %vm682 = vcmp.gt.f32.partialorder %v349, 0.5
        %vm683 = vcmp.gt.f32.partialorder %v350, 0.5
        %v684 = vsel %vm682, -1e+09, 0.0
        %v685 = vsel %vm683, -1e+09, 0.0
        %v686 = vsub.f32 1.0, %v349
        %v687 = vsub.f32 1.0, %v350
        %vm688 = vcmask 64512
        %v689 = vsel %vm688, %v686, 0.0
        %690 = vadd.xlane.f32.xlu0 %v689
        %v691 = vpop.xlane.xlu0 %690
        %v692 = vsel %vm688, %v687, 0.0
        %693 = vadd.xlane.f32.xlu0 %v692
        %v694 = vpop.xlane.xlu0 %693
        %v697 = vcombine.high %v684, %v684
        %v699 = vunpack.c.l.s4 1966171168
        %v700 = vunpack.c.0.s8 %v699
        %v701 = vlaneseq
        %v702 = vshrl.u32 %v701, 7
        %v703 = vsub.s32 %v700, %v702
        %v704 = vrot.slane %v684, %v703
        %v706 = vunpack.c.l.s4 1966171168
        %v707 = vunpack.c.0.s8 %v706
        %v708 = vlaneseq
        %v709 = vshrl.u32 %v708, 7
        %v710 = vsub.s32 %v707, %v709
        %v711 = vrot.slane %v697, %v710
        %v712 = vcombine.high %v704, %v704
        %v713 = vcombine.high %v711, %v711
        %v715 = vunpack.c.l.s4 1966171168
        %v716 = vunpack.c.0.s8 %v715
        %v717 = vlaneseq
        %v718 = vshrl.u32 %v717, 7
        %v719 = vsub.s32 %v716, %v718
        %v720 = vrot.slane %v704, %v719
        %v722 = vunpack.c.l.s4 1966171168
        %v723 = vunpack.c.0.s8 %v722
        %v724 = vlaneseq
        %v725 = vshrl.u32 %v724, 7
        %v726 = vsub.s32 %v723, %v725
        %v727 = vrot.slane %v711, %v726
        %v729 = vunpack.c.l.s4 1966171168
        %v730 = vunpack.c.0.s8 %v729
        %v731 = vlaneseq
        %v732 = vshrl.u32 %v731, 7
        %v733 = vsub.s32 %v730, %v732
        %v734 = vrot.slane %v712, %v733
        %v736 = vunpack.c.l.s4 1966171168
        %v737 = vunpack.c.0.s8 %v736
        %v738 = vlaneseq
        %v739 = vshrl.u32 %v738, 7
        %v740 = vsub.s32 %v737, %v739
        %v741 = vrot.slane %v713, %v740
        %v742 = vcombine.high %v720, %v720
        %v743 = vcombine.high %v727, %v727
        %v744 = vcombine.high %v734, %v734
        %v745 = vcombine.high %v741, %v741
        %v746 = vcombine.high %v685, %v685
        %v748 = vunpack.c.l.s4 1966171168
        %v749 = vunpack.c.0.s8 %v748
        %v750 = vlaneseq
        %v751 = vshrl.u32 %v750, 7
        %v752 = vsub.s32 %v749, %v751
        %v753 = vrot.slane %v685, %v752
        %v755 = vunpack.c.l.s4 1966171168
        %v756 = vunpack.c.0.s8 %v755
        %v757 = vlaneseq
        %v758 = vshrl.u32 %v757, 7
        %v759 = vsub.s32 %v756, %v758
        %v760 = vrot.slane %v746, %v759
        %v761 = vcombine.high %v753, %v753
        %v762 = vcombine.high %v760, %v760
        %v764 = vunpack.c.l.s4 1966171168
        %v765 = vunpack.c.0.s8 %v764
        %v766 = vlaneseq
        %v767 = vshrl.u32 %v766, 7
        %v768 = vsub.s32 %v765, %v767
        %v769 = vrot.slane %v753, %v768
        %v771 = vunpack.c.l.s4 1966171168
        %v772 = vunpack.c.0.s8 %v771
        %v773 = vlaneseq
        %v774 = vshrl.u32 %v773, 7
        %v775 = vsub.s32 %v772, %v774
        %v776 = vrot.slane %v760, %v775
        %v778 = vunpack.c.l.s4 1966171168
        %v779 = vunpack.c.0.s8 %v778
        %v780 = vlaneseq
        %v781 = vshrl.u32 %v780, 7
        %v782 = vsub.s32 %v779, %v781
        %v783 = vrot.slane %v761, %v782
        %v785 = vunpack.c.l.s4 1966171168
        %v786 = vunpack.c.0.s8 %v785
        %v787 = vlaneseq
        %v788 = vshrl.u32 %v787, 7
        %v789 = vsub.s32 %v786, %v788
        %v790 = vrot.slane %v762, %v789
        %v791 = vcombine.high %v769, %v769
        %v792 = vcombine.high %v776, %v776
        %v793 = vcombine.high %v783, %v783
        %v794 = vcombine.high %v790, %v790
        %v795 = vlaneseq
        %v796 = vshrl.u32 %v795, 7
        %v797 = vsub.s32 0, %v796
        %v798 = vrot.slane %v720, %v797
        %v799 = vlaneseq
        %v800 = vshrl.u32 %v799, 7
        %v801 = vsub.s32 0, %v800
        %v802 = vrot.slane %v734, %v801
        %v803 = vlaneseq
        %v804 = vshrl.u32 %v803, 7
        %v805 = vsub.s32 0, %v804
        %v806 = vrot.slane %v742, %v805
        %v807 = vlaneseq
        %v808 = vshrl.u32 %v807, 7
        %v809 = vsub.s32 0, %v808
        %v810 = vrot.slane %v744, %v809
        %v811 = vlaneseq
        %v812 = vshrl.u32 %v811, 7
        %v813 = vsub.s32 0, %v812
        %v814 = vrot.slane %v727, %v813
        %v815 = vlaneseq
        %v816 = vshrl.u32 %v815, 7
        %v817 = vsub.s32 0, %v816
        %v818 = vrot.slane %v741, %v817
        %v819 = vlaneseq
        %v820 = vshrl.u32 %v819, 7
        %v821 = vsub.s32 0, %v820
        %v822 = vrot.slane %v743, %v821
        %v823 = vlaneseq
        %v824 = vshrl.u32 %v823, 7
        %v825 = vsub.s32 0, %v824
        %v826 = vrot.slane %v745, %v825
        %v827 = vlaneseq
        %v828 = vshrl.u32 %v827, 7
        %v829 = vsub.s32 0, %v828
        %v830 = vrot.slane %v769, %v829
        %v831 = vlaneseq
        %v832 = vshrl.u32 %v831, 7
        %v833 = vsub.s32 0, %v832
        %v834 = vrot.slane %v783, %v833
        %v835 = vlaneseq
        %v836 = vshrl.u32 %v835, 7
        %v837 = vsub.s32 0, %v836
        %v838 = vrot.slane %v791, %v837
        %v839 = vlaneseq
        %v840 = vshrl.u32 %v839, 7
        %v841 = vsub.s32 0, %v840
        %v842 = vrot.slane %v793, %v841
        %v843 = vlaneseq
        %v844 = vshrl.u32 %v843, 7
        %v845 = vsub.s32 0, %v844
        %v846 = vrot.slane %v776, %v845
        %v847 = vlaneseq
        %v848 = vshrl.u32 %v847, 7
        %v849 = vsub.s32 0, %v848
        %v850 = vrot.slane %v790, %v849
        %v851 = vlaneseq
        %v852 = vshrl.u32 %v851, 7
        %v853 = vsub.s32 0, %v852
        %v854 = vrot.slane %v792, %v853
        %v855 = vlaneseq
        %v856 = vshrl.u32 %v855, 7
        %v857 = vsub.s32 0, %v856
        %v858 = vrot.slane %v794, %v857
        %v876 = vsel %vm405, %v533, 0
        %v879 = vsel %vm405, %v666, 0
        %881 = vmatprep.subr.bf16.mxu0 0
        %882 = vmatpush1.bf16.xpose.msra.mxu0 0
        %883 = vmatprep.subr.bf16.mxu0 0
        %884 = vmatpush1.bf16.xpose.msra.mxu0 0
        %885 = vmatprep.subr.bf16.mxu0 0
        %886 = vmatpush1.bf16.xpose.msra.mxu0 0
        %887 = vmatprep.subr.bf16.mxu0 0
        %888 = vmatpush1.bf16.xpose.msra.mxu0 0
        %889 = vmatprep.subr.bf16.mxu0 0
        %890 = vmatpush1.bf16.xpose.msra.mxu0 0
        %891 = vmatprep.subr.bf16.mxu0 0
        %892 = vmatpush1.bf16.xpose.msra.mxu0 0
        %893 = vmatprep.subr.bf16.mxu0 0
        %894 = vmatpush1.bf16.xpose.msra.mxu0 0
        %895 = vmatprep.subr.bf16.mxu0 0
        %896 = vmatpush1.bf16.xpose.msra.mxu0 %v879
        %897 = vmatprep.subr.bf16.mxu0 0
        %898 = vmatpush2.bf16.xpose.msra.mxu0 0
        %899 = vmatprep.subr.bf16.mxu0 0
        %900 = vmatpush2.bf16.xpose.msra.mxu0 0
        %901 = vmatprep.subr.bf16.mxu0 0
        %902 = vmatpush2.bf16.xpose.msra.mxu0 0
        %903 = vmatprep.subr.bf16.mxu0 0
        %904 = vmatpush2.bf16.xpose.msra.mxu0 0
        %905 = vmatprep.subr.bf16.mxu0 0
        %906 = vmatpush2.bf16.xpose.msra.mxu0 0
        %907 = vmatprep.subr.bf16.mxu0 0
        %908 = vmatpush2.bf16.xpose.msra.mxu0 0
        %909 = vmatprep.subr.bf16.mxu0 0
        %910 = vmatpush2.bf16.xpose.msra.mxu0 0
        %911 = vmatprep.subr.bf16.mxu0 0
        %912 = vmatpush2.bf16.xpose.msra.mxu0 0
        %913 = vmatprep.mubr.bf16.mxu0 0
        %914 = vmatmul.mubr.bf16.gmra.mxu0 %v876
        %v915 = vpop.f32.mrf.mxu0
        %v916 = vadd.f32 %v798, %v915
        %v917 = vpop.f32.mrf.mxu0
        %v918 = vpop.f32.mrf.mxu0
        %v919 = vpop.f32.mrf.mxu0
        %920 = vdwg.mxu0
        %v922 = vsel %vm405, %v534, 0
        %v925 = vsel %vm405, %v667, 0
        %927 = vmatprep.subr.bf16.mxu0 0
        %928 = vmatpush1.bf16.xpose.msra.mxu0 0
        %929 = vmatprep.subr.bf16.mxu0 0
        %930 = vmatpush1.bf16.xpose.msra.mxu0 0
        %931 = vmatprep.subr.bf16.mxu0 0
        %932 = vmatpush1.bf16.xpose.msra.mxu0 0
        %933 = vmatprep.subr.bf16.mxu0 0
        %934 = vmatpush1.bf16.xpose.msra.mxu0 0
        %935 = vmatprep.subr.bf16.mxu0 0
        %936 = vmatpush1.bf16.xpose.msra.mxu0 0
        %937 = vmatprep.subr.bf16.mxu0 0
        %938 = vmatpush1.bf16.xpose.msra.mxu0 0
        %939 = vmatprep.subr.bf16.mxu0 0
        %940 = vmatpush1.bf16.xpose.msra.mxu0 0
        %941 = vmatprep.subr.bf16.mxu0 0
        %942 = vmatpush1.bf16.xpose.msra.mxu0 %v925
        %943 = vmatprep.subr.bf16.mxu0 0
        %944 = vmatpush2.bf16.xpose.msra.mxu0 0
        %945 = vmatprep.subr.bf16.mxu0 0
        %946 = vmatpush2.bf16.xpose.msra.mxu0 0
        %947 = vmatprep.subr.bf16.mxu0 0
        %948 = vmatpush2.bf16.xpose.msra.mxu0 0
        %949 = vmatprep.subr.bf16.mxu0 0
        %950 = vmatpush2.bf16.xpose.msra.mxu0 0
        %951 = vmatprep.subr.bf16.mxu0 0
        %952 = vmatpush2.bf16.xpose.msra.mxu0 0
        %953 = vmatprep.subr.bf16.mxu0 0
        %954 = vmatpush2.bf16.xpose.msra.mxu0 0
        %955 = vmatprep.subr.bf16.mxu0 0
        %956 = vmatpush2.bf16.xpose.msra.mxu0 0
        %957 = vmatprep.subr.bf16.mxu0 0
        %958 = vmatpush2.bf16.xpose.msra.mxu0 0
        %959 = vmatprep.mubr.bf16.mxu0 0
        %960 = vmatmul.mubr.bf16.gmra.mxu0 %v922
        %v961 = vpop.f32.mrf.mxu0
        %v962 = vadd.f32 %v802, %v961
        %v963 = vpop.f32.mrf.mxu0
        %v964 = vpop.f32.mrf.mxu0
        %v965 = vpop.f32.mrf.mxu0
        %966 = vdwg.mxu0
        %v968 = vsel %vm405, %v535, 0
        %v971 = vsel %vm405, %v668, 0
        %973 = vmatprep.subr.bf16.mxu0 0
        %974 = vmatpush1.bf16.xpose.msra.mxu0 0
        %975 = vmatprep.subr.bf16.mxu0 0
        %976 = vmatpush1.bf16.xpose.msra.mxu0 0
        %977 = vmatprep.subr.bf16.mxu0 0
        %978 = vmatpush1.bf16.xpose.msra.mxu0 0
        %979 = vmatprep.subr.bf16.mxu0 0
        %980 = vmatpush1.bf16.xpose.msra.mxu0 0
        %981 = vmatprep.subr.bf16.mxu0 0
        %982 = vmatpush1.bf16.xpose.msra.mxu0 0
        %983 = vmatprep.subr.bf16.mxu0 0
        %984 = vmatpush1.bf16.xpose.msra.mxu0 0
        %985 = vmatprep.subr.bf16.mxu0 0
        %986 = vmatpush1.bf16.xpose.msra.mxu0 0
        %987 = vmatprep.subr.bf16.mxu0 0
        %988 = vmatpush1.bf16.xpose.msra.mxu0 %v971
        %989 = vmatprep.subr.bf16.mxu0 0
        %990 = vmatpush2.bf16.xpose.msra.mxu0 0
        %991 = vmatprep.subr.bf16.mxu0 0
        %992 = vmatpush2.bf16.xpose.msra.mxu0 0
        %993 = vmatprep.subr.bf16.mxu0 0
        %994 = vmatpush2.bf16.xpose.msra.mxu0 0
        %995 = vmatprep.subr.bf16.mxu0 0
        %996 = vmatpush2.bf16.xpose.msra.mxu0 0
        %997 = vmatprep.subr.bf16.mxu0 0
        %998 = vmatpush2.bf16.xpose.msra.mxu0 0
        %999 = vmatprep.subr.bf16.mxu0 0
        %1000 = vmatpush2.bf16.xpose.msra.mxu0 0
        %1001 = vmatprep.subr.bf16.mxu0 0
        %1002 = vmatpush2.bf16.xpose.msra.mxu0 0
        %1003 = vmatprep.subr.bf16.mxu0 0
        %1004 = vmatpush2.bf16.xpose.msra.mxu0 0
        %1005 = vmatprep.mubr.bf16.mxu0 0
        %1006 = vmatmul.mubr.bf16.gmra.mxu0 %v968
        %v1007 = vpop.f32.mrf.mxu0
        %v1008 = vadd.f32 %v806, %v1007
        %v1009 = vpop.f32.mrf.mxu0
        %v1010 = vpop.f32.mrf.mxu0
        %v1011 = vpop.f32.mrf.mxu0
        %1012 = vdwg.mxu0
        %v1014 = vsel %vm405, %v536, 0
        %v1017 = vsel %vm405, %v669, 0
        %1019 = vmatprep.subr.bf16.mxu0 0
        %1020 = vmatpush1.bf16.xpose.msra.mxu0 0
        %1021 = vmatprep.subr.bf16.mxu0 0
        %1022 = vmatpush1.bf16.xpose.msra.mxu0 0
        %1023 = vmatprep.subr.bf16.mxu0 0
        %1024 = vmatpush1.bf16.xpose.msra.mxu0 0
        %1025 = vmatprep.subr.bf16.mxu0 0
        %1026 = vmatpush1.bf16.xpose.msra.mxu0 0
        %1027 = vmatprep.subr.bf16.mxu0 0
        %1028 = vmatpush1.bf16.xpose.msra.mxu0 0
        %1029 = vmatprep.subr.bf16.mxu0 0
        %1030 = vmatpush1.bf16.xpose.msra.mxu0 0
        %1031 = vmatprep.subr.bf16.mxu0 0
        %1032 = vmatpush1.bf16.xpose.msra.mxu0 0
        %1033 = vmatprep.subr.bf16.mxu0 0
        %1034 = vmatpush1.bf16.xpose.msra.mxu0 %v1017
        %1035 = vmatprep.subr.bf16.mxu0 0
        %1036 = vmatpush2.bf16.xpose.msra.mxu0 0
        %1037 = vmatprep.subr.bf16.mxu0 0
        %1038 = vmatpush2.bf16.xpose.msra.mxu0 0
        %1039 = vmatprep.subr.bf16.mxu0 0
        %1040 = vmatpush2.bf16.xpose.msra.mxu0 0
        %1041 = vmatprep.subr.bf16.mxu0 0
        %1042 = vmatpush2.bf16.xpose.msra.mxu0 0
        %1043 = vmatprep.subr.bf16.mxu0 0
        %1044 = vmatpush2.bf16.xpose.msra.mxu0 0
        %1045 = vmatprep.subr.bf16.mxu0 0
        %1046 = vmatpush2.bf16.xpose.msra.mxu0 0
        %1047 = vmatprep.subr.bf16.mxu0 0
        %1048 = vmatpush2.bf16.xpose.msra.mxu0 0
        %1049 = vmatprep.subr.bf16.mxu0 0
        %1050 = vmatpush2.bf16.xpose.msra.mxu0 0
        %1051 = vmatprep.mubr.bf16.mxu0 0
        %1052 = vmatmul.mubr.bf16.gmra.mxu0 %v1014
        %v1053 = vpop.f32.mrf.mxu0
        %v1054 = vadd.f32 %v810, %v1053
        %v1055 = vpop.f32.mrf.mxu0
        %v1056 = vpop.f32.mrf.mxu0
        %v1057 = vpop.f32.mrf.mxu0
        %1058 = vdwg.mxu0
        %v1060 = vsel %vm405, %v537, 0
        %v1063 = vsel %vm405, %v670, 0
        %1065 = vmatprep.subr.bf16.mxu0 0
        %1066 = vmatpush1.bf16.xpose.msra.mxu0 0
        %1067 = vmatprep.subr.bf16.mxu0 0
        %1068 = vmatpush1.bf16.xpose.msra.mxu0 0
        %1069 = vmatprep.subr.bf16.mxu0 0
        %1070 = vmatpush1.bf16.xpose.msra.mxu0 0
        %1071 = vmatprep.subr.bf16.mxu0 0
        %1072 = vmatpush1.bf16.xpose.msra.mxu0 0
        %1073 = vmatprep.subr.bf16.mxu0 0
        %1074 = vmatpush1.bf16.xpose.msra.mxu0 0
        %1075 = vmatprep.subr.bf16.mxu0 0
        %1076 = vmatpush1.bf16.xpose.msra.mxu0 0
        %1077 = vmatprep.subr.bf16.mxu0 0
        %1078 = vmatpush1.bf16.xpose.msra.mxu0 0
        %1079 = vmatprep.subr.bf16.mxu0 0
        %1080 = vmatpush1.bf16.xpose.msra.mxu0 %v1063
        %1081 = vmatprep.subr.bf16.mxu0 0
        %1082 = vmatpush2.bf16.xpose.msra.mxu0 0
        %1083 = vmatprep.subr.bf16.mxu0 0
        %1084 = vmatpush2.bf16.xpose.msra.mxu0 0
        %1085 = vmatprep.subr.bf16.mxu0 0
        %1086 = vmatpush2.bf16.xpose.msra.mxu0 0
        %1087 = vmatprep.subr.bf16.mxu0 0
        %1088 = vmatpush2.bf16.xpose.msra.mxu0 0
        %1089 = vmatprep.subr.bf16.mxu0 0
        %1090 = vmatpush2.bf16.xpose.msra.mxu0 0
        %1091 = vmatprep.subr.bf16.mxu0 0
        %1092 = vmatpush2.bf16.xpose.msra.mxu0 0
        %1093 = vmatprep.subr.bf16.mxu0 0
        %1094 = vmatpush2.bf16.xpose.msra.mxu0 0
        %1095 = vmatprep.subr.bf16.mxu0 0
        %1096 = vmatpush2.bf16.xpose.msra.mxu0 0
        %1097 = vmatprep.mubr.bf16.mxu0 0
        %1098 = vmatmul.mubr.bf16.gmra.mxu0 %v1060
        %v1099 = vpop.f32.mrf.mxu0
        %v1100 = vadd.f32 %v814, %v1099
        %v1101 = vpop.f32.mrf.mxu0
        %v1102 = vpop.f32.mrf.mxu0
        %v1103 = vpop.f32.mrf.mxu0
        %1104 = vdwg.mxu0
        %v1106 = vsel %vm405, %v538, 0
        %v1109 = vsel %vm405, %v671, 0
        %1111 = vmatprep.subr.bf16.mxu0 0
        %1112 = vmatpush1.bf16.xpose.msra.mxu0 0
        %1113 = vmatprep.subr.bf16.mxu0 0
        %1114 = vmatpush1.bf16.xpose.msra.mxu0 0
        %1115 = vmatprep.subr.bf16.mxu0 0
        %1116 = vmatpush1.bf16.xpose.msra.mxu0 0
        %1117 = vmatprep.subr.bf16.mxu0 0
        %1118 = vmatpush1.bf16.xpose.msra.mxu0 0
        %1119 = vmatprep.subr.bf16.mxu0 0
        %1120 = vmatpush1.bf16.xpose.msra.mxu0 0
        %1121 = vmatprep.subr.bf16.mxu0 0
        %1122 = vmatpush1.bf16.xpose.msra.mxu0 0
        %1123 = vmatprep.subr.bf16.mxu0 0
        %1124 = vmatpush1.bf16.xpose.msra.mxu0 0
        %1125 = vmatprep.subr.bf16.mxu0 0
        %1126 = vmatpush1.bf16.xpose.msra.mxu0 %v1109
        %1127 = vmatprep.subr.bf16.mxu0 0
        %1128 = vmatpush2.bf16.xpose.msra.mxu0 0
        %1129 = vmatprep.subr.bf16.mxu0 0
        %1130 = vmatpush2.bf16.xpose.msra.mxu0 0
        %1131 = vmatprep.subr.bf16.mxu0 0
        %1132 = vmatpush2.bf16.xpose.msra.mxu0 0
        %1133 = vmatprep.subr.bf16.mxu0 0
        %1134 = vmatpush2.bf16.xpose.msra.mxu0 0
        %1135 = vmatprep.subr.bf16.mxu0 0
        %1136 = vmatpush2.bf16.xpose.msra.mxu0 0
        %1137 = vmatprep.subr.bf16.mxu0 0
        %1138 = vmatpush2.bf16.xpose.msra.mxu0 0
        %1139 = vmatprep.subr.bf16.mxu0 0
        %1140 = vmatpush2.bf16.xpose.msra.mxu0 0
        %1141 = vmatprep.subr.bf16.mxu0 0
        %1142 = vmatpush2.bf16.xpose.msra.mxu0 0
        %1143 = vmatprep.mubr.bf16.mxu0 0
        %1144 = vmatmul.mubr.bf16.gmra.mxu0 %v1106
        %v1145 = vpop.f32.mrf.mxu0
        %v1146 = vadd.f32 %v818, %v1145
        %v1147 = vpop.f32.mrf.mxu0
        %v1148 = vpop.f32.mrf.mxu0
        %v1149 = vpop.f32.mrf.mxu0
        %1150 = vdwg.mxu0
        %v1152 = vsel %vm405, %v539, 0
        %v1155 = vsel %vm405, %v672, 0
        %1157 = vmatprep.subr.bf16.mxu0 0
        %1158 = vmatpush1.bf16.xpose.msra.mxu0 0
        %1159 = vmatprep.subr.bf16.mxu0 0
        %1160 = vmatpush1.bf16.xpose.msra.mxu0 0
        %1161 = vmatprep.subr.bf16.mxu0 0
        %1162 = vmatpush1.bf16.xpose.msra.mxu0 0
        %1163 = vmatprep.subr.bf16.mxu0 0
        %1164 = vmatpush1.bf16.xpose.msra.mxu0 0
        %1165 = vmatprep.subr.bf16.mxu0 0
        %1166 = vmatpush1.bf16.xpose.msra.mxu0 0
        %1167 = vmatprep.subr.bf16.mxu0 0
        %1168 = vmatpush1.bf16.xpose.msra.mxu0 0
        %1169 = vmatprep.subr.bf16.mxu0 0
        %1170 = vmatpush1.bf16.xpose.msra.mxu0 0
        %1171 = vmatprep.subr.bf16.mxu0 0
        %1172 = vmatpush1.bf16.xpose.msra.mxu0 %v1155
        %1173 = vmatprep.subr.bf16.mxu0 0
        %1174 = vmatpush2.bf16.xpose.msra.mxu0 0
        %1175 = vmatprep.subr.bf16.mxu0 0
        %1176 = vmatpush2.bf16.xpose.msra.mxu0 0
        %1177 = vmatprep.subr.bf16.mxu0 0
        %1178 = vmatpush2.bf16.xpose.msra.mxu0 0
        %1179 = vmatprep.subr.bf16.mxu0 0
        %1180 = vmatpush2.bf16.xpose.msra.mxu0 0
        %1181 = vmatprep.subr.bf16.mxu0 0
        %1182 = vmatpush2.bf16.xpose.msra.mxu0 0
        %1183 = vmatprep.subr.bf16.mxu0 0
        %1184 = vmatpush2.bf16.xpose.msra.mxu0 0
        %1185 = vmatprep.subr.bf16.mxu0 0
        %1186 = vmatpush2.bf16.xpose.msra.mxu0 0
        %1187 = vmatprep.subr.bf16.mxu0 0
        %1188 = vmatpush2.bf16.xpose.msra.mxu0 0
        %1189 = vmatprep.mubr.bf16.mxu0 0
        %1190 = vmatmul.mubr.bf16.gmra.mxu0 %v1152
        %v1191 = vpop.f32.mrf.mxu0
        %v1192 = vadd.f32 %v822, %v1191
        %v1193 = vpop.f32.mrf.mxu0
        %v1194 = vpop.f32.mrf.mxu0
        %v1195 = vpop.f32.mrf.mxu0
        %1196 = vdwg.mxu0
        %v1198 = vsel %vm405, %v540, 0
        %v1201 = vsel %vm405, %v673, 0
        %1203 = vmatprep.subr.bf16.mxu0 0
        %1204 = vmatpush1.bf16.xpose.msra.mxu0 0
        %1205 = vmatprep.subr.bf16.mxu0 0
        %1206 = vmatpush1.bf16.xpose.msra.mxu0 0
        %1207 = vmatprep.subr.bf16.mxu0 0
        %1208 = vmatpush1.bf16.xpose.msra.mxu0 0
        %1209 = vmatprep.subr.bf16.mxu0 0
        %1210 = vmatpush1.bf16.xpose.msra.mxu0 0
        %1211 = vmatprep.subr.bf16.mxu0 0
        %1212 = vmatpush1.bf16.xpose.msra.mxu0 0
        %1213 = vmatprep.subr.bf16.mxu0 0
        %1214 = vmatpush1.bf16.xpose.msra.mxu0 0
        %1215 = vmatprep.subr.bf16.mxu0 0
        %1216 = vmatpush1.bf16.xpose.msra.mxu0 0
        %1217 = vmatprep.subr.bf16.mxu0 0
        %1218 = vmatpush1.bf16.xpose.msra.mxu0 %v1201
        %1219 = vmatprep.subr.bf16.mxu0 0
        %1220 = vmatpush2.bf16.xpose.msra.mxu0 0
        %1221 = vmatprep.subr.bf16.mxu0 0
        %1222 = vmatpush2.bf16.xpose.msra.mxu0 0
        %1223 = vmatprep.subr.bf16.mxu0 0
        %1224 = vmatpush2.bf16.xpose.msra.mxu0 0
        %1225 = vmatprep.subr.bf16.mxu0 0
        %1226 = vmatpush2.bf16.xpose.msra.mxu0 0
        %1227 = vmatprep.subr.bf16.mxu0 0
        %1228 = vmatpush2.bf16.xpose.msra.mxu0 0
        %1229 = vmatprep.subr.bf16.mxu0 0
        %1230 = vmatpush2.bf16.xpose.msra.mxu0 0
        %1231 = vmatprep.subr.bf16.mxu0 0
        %1232 = vmatpush2.bf16.xpose.msra.mxu0 0
        %1233 = vmatprep.subr.bf16.mxu0 0
        %1234 = vmatpush2.bf16.xpose.msra.mxu0 0
        %1235 = vmatprep.mubr.bf16.mxu0 0
        %1236 = vmatmul.mubr.bf16.gmra.mxu0 %v1198
        %v1237 = vpop.f32.mrf.mxu0
        %v1238 = vadd.f32 %v826, %v1237
        %v1239 = vpop.f32.mrf.mxu0
        %v1240 = vpop.f32.mrf.mxu0
        %v1241 = vpop.f32.mrf.mxu0
        %1242 = vdwg.mxu0
        %v1244 = vsel %vm405, %v541, 0
        %v1247 = vsel %vm405, %v674, 0
        %1249 = vmatprep.subr.bf16.mxu0 0
        %1250 = vmatpush1.bf16.xpose.msra.mxu0 0
        %1251 = vmatprep.subr.bf16.mxu0 0
        %1252 = vmatpush1.bf16.xpose.msra.mxu0 0
        %1253 = vmatprep.subr.bf16.mxu0 0
        %1254 = vmatpush1.bf16.xpose.msra.mxu0 0
        %1255 = vmatprep.subr.bf16.mxu0 0
        %1256 = vmatpush1.bf16.xpose.msra.mxu0 0
        %1257 = vmatprep.subr.bf16.mxu0 0
        %1258 = vmatpush1.bf16.xpose.msra.mxu0 0
        %1259 = vmatprep.subr.bf16.mxu0 0
        %1260 = vmatpush1.bf16.xpose.msra.mxu0 0
        %1261 = vmatprep.subr.bf16.mxu0 0
        %1262 = vmatpush1.bf16.xpose.msra.mxu0 0
        %1263 = vmatprep.subr.bf16.mxu0 0
        %1264 = vmatpush1.bf16.xpose.msra.mxu0 %v1247
        %1265 = vmatprep.subr.bf16.mxu0 0
        %1266 = vmatpush2.bf16.xpose.msra.mxu0 0
        %1267 = vmatprep.subr.bf16.mxu0 0
        %1268 = vmatpush2.bf16.xpose.msra.mxu0 0
        %1269 = vmatprep.subr.bf16.mxu0 0
        %1270 = vmatpush2.bf16.xpose.msra.mxu0 0
        %1271 = vmatprep.subr.bf16.mxu0 0
        %1272 = vmatpush2.bf16.xpose.msra.mxu0 0
        %1273 = vmatprep.subr.bf16.mxu0 0
        %1274 = vmatpush2.bf16.xpose.msra.mxu0 0
        %1275 = vmatprep.subr.bf16.mxu0 0
        %1276 = vmatpush2.bf16.xpose.msra.mxu0 0
        %1277 = vmatprep.subr.bf16.mxu0 0
        %1278 = vmatpush2.bf16.xpose.msra.mxu0 0
        %1279 = vmatprep.subr.bf16.mxu0 0
        %1280 = vmatpush2.bf16.xpose.msra.mxu0 0
        %1281 = vmatprep.mubr.bf16.mxu0 0
        %1282 = vmatmul.mubr.bf16.gmra.mxu0 %v1244
        %v1283 = vpop.f32.mrf.mxu0
        %v1284 = vadd.f32 %v830, %v1283
        %v1285 = vpop.f32.mrf.mxu0
        %v1286 = vpop.f32.mrf.mxu0
        %v1287 = vpop.f32.mrf.mxu0
        %1288 = vdwg.mxu0
        %v1290 = vsel %vm405, %v542, 0
        %v1293 = vsel %vm405, %v675, 0
        %1295 = vmatprep.subr.bf16.mxu0 0
        %1296 = vmatpush1.bf16.xpose.msra.mxu0 0
        %1297 = vmatprep.subr.bf16.mxu0 0
        %1298 = vmatpush1.bf16.xpose.msra.mxu0 0
        %1299 = vmatprep.subr.bf16.mxu0 0
        %1300 = vmatpush1.bf16.xpose.msra.mxu0 0
        %1301 = vmatprep.subr.bf16.mxu0 0
        %1302 = vmatpush1.bf16.xpose.msra.mxu0 0
        %1303 = vmatprep.subr.bf16.mxu0 0
        %1304 = vmatpush1.bf16.xpose.msra.mxu0 0
        %1305 = vmatprep.subr.bf16.mxu0 0
        %1306 = vmatpush1.bf16.xpose.msra.mxu0 0
        %1307 = vmatprep.subr.bf16.mxu0 0
        %1308 = vmatpush1.bf16.xpose.msra.mxu0 0
        %1309 = vmatprep.subr.bf16.mxu0 0
        %1310 = vmatpush1.bf16.xpose.msra.mxu0 %v1293
        %1311 = vmatprep.subr.bf16.mxu0 0
        %1312 = vmatpush2.bf16.xpose.msra.mxu0 0
        %1313 = vmatprep.subr.bf16.mxu0 0
        %1314 = vmatpush2.bf16.xpose.msra.mxu0 0
        %1315 = vmatprep.subr.bf16.mxu0 0
        %1316 = vmatpush2.bf16.xpose.msra.mxu0 0
        %1317 = vmatprep.subr.bf16.mxu0 0
        %1318 = vmatpush2.bf16.xpose.msra.mxu0 0
        %1319 = vmatprep.subr.bf16.mxu0 0
        %1320 = vmatpush2.bf16.xpose.msra.mxu0 0
        %1321 = vmatprep.subr.bf16.mxu0 0
        %1322 = vmatpush2.bf16.xpose.msra.mxu0 0
        %1323 = vmatprep.subr.bf16.mxu0 0
        %1324 = vmatpush2.bf16.xpose.msra.mxu0 0
        %1325 = vmatprep.subr.bf16.mxu0 0
        %1326 = vmatpush2.bf16.xpose.msra.mxu0 0
        %1327 = vmatprep.mubr.bf16.mxu0 0
        %1328 = vmatmul.mubr.bf16.gmra.mxu0 %v1290
        %v1329 = vpop.f32.mrf.mxu0
        %v1330 = vadd.f32 %v834, %v1329
        %v1331 = vpop.f32.mrf.mxu0
        %v1332 = vpop.f32.mrf.mxu0
        %v1333 = vpop.f32.mrf.mxu0
        %1334 = vdwg.mxu0
        %v1336 = vsel %vm405, %v543, 0
        %v1339 = vsel %vm405, %v676, 0
        %1341 = vmatprep.subr.bf16.mxu0 0
        %1342 = vmatpush1.bf16.xpose.msra.mxu0 0
        %1343 = vmatprep.subr.bf16.mxu0 0
        %1344 = vmatpush1.bf16.xpose.msra.mxu0 0
        %1345 = vmatprep.subr.bf16.mxu0 0
        %1346 = vmatpush1.bf16.xpose.msra.mxu0 0
        %1347 = vmatprep.subr.bf16.mxu0 0
        %1348 = vmatpush1.bf16.xpose.msra.mxu0 0
        %1349 = vmatprep.subr.bf16.mxu0 0
        %1350 = vmatpush1.bf16.xpose.msra.mxu0 0
        %1351 = vmatprep.subr.bf16.mxu0 0
        %1352 = vmatpush1.bf16.xpose.msra.mxu0 0
        %1353 = vmatprep.subr.bf16.mxu0 0
        %1354 = vmatpush1.bf16.xpose.msra.mxu0 0
        %1355 = vmatprep.subr.bf16.mxu0 0
        %1356 = vmatpush1.bf16.xpose.msra.mxu0 %v1339
        %1357 = vmatprep.subr.bf16.mxu0 0
        %1358 = vmatpush2.bf16.xpose.msra.mxu0 0
        %1359 = vmatprep.subr.bf16.mxu0 0
        %1360 = vmatpush2.bf16.xpose.msra.mxu0 0
        %1361 = vmatprep.subr.bf16.mxu0 0
        %1362 = vmatpush2.bf16.xpose.msra.mxu0 0
        %1363 = vmatprep.subr.bf16.mxu0 0
        %1364 = vmatpush2.bf16.xpose.msra.mxu0 0
        %1365 = vmatprep.subr.bf16.mxu0 0
        %1366 = vmatpush2.bf16.xpose.msra.mxu0 0
        %1367 = vmatprep.subr.bf16.mxu0 0
        %1368 = vmatpush2.bf16.xpose.msra.mxu0 0
        %1369 = vmatprep.subr.bf16.mxu0 0
        %1370 = vmatpush2.bf16.xpose.msra.mxu0 0
        %1371 = vmatprep.subr.bf16.mxu0 0
        %1372 = vmatpush2.bf16.xpose.msra.mxu0 0
        %1373 = vmatprep.mubr.bf16.mxu0 0
        %1374 = vmatmul.mubr.bf16.gmra.mxu0 %v1336
        %v1375 = vpop.f32.mrf.mxu0
        %v1376 = vadd.f32 %v838, %v1375
        %v1377 = vpop.f32.mrf.mxu0
        %v1378 = vpop.f32.mrf.mxu0
        %v1379 = vpop.f32.mrf.mxu0
        %1380 = vdwg.mxu0
        %v1382 = vsel %vm405, %v544, 0
        %v1385 = vsel %vm405, %v677, 0
        %1387 = vmatprep.subr.bf16.mxu0 0
        %1388 = vmatpush1.bf16.xpose.msra.mxu0 0
        %1389 = vmatprep.subr.bf16.mxu0 0
        %1390 = vmatpush1.bf16.xpose.msra.mxu0 0
        %1391 = vmatprep.subr.bf16.mxu0 0
        %1392 = vmatpush1.bf16.xpose.msra.mxu0 0
        %1393 = vmatprep.subr.bf16.mxu0 0
        %1394 = vmatpush1.bf16.xpose.msra.mxu0 0
        %1395 = vmatprep.subr.bf16.mxu0 0
        %1396 = vmatpush1.bf16.xpose.msra.mxu0 0
        %1397 = vmatprep.subr.bf16.mxu0 0
        %1398 = vmatpush1.bf16.xpose.msra.mxu0 0
        %1399 = vmatprep.subr.bf16.mxu0 0
        %1400 = vmatpush1.bf16.xpose.msra.mxu0 0
        %1401 = vmatprep.subr.bf16.mxu0 0
        %1402 = vmatpush1.bf16.xpose.msra.mxu0 %v1385
        %1403 = vmatprep.subr.bf16.mxu0 0
        %1404 = vmatpush2.bf16.xpose.msra.mxu0 0
        %1405 = vmatprep.subr.bf16.mxu0 0
        %1406 = vmatpush2.bf16.xpose.msra.mxu0 0
        %1407 = vmatprep.subr.bf16.mxu0 0
        %1408 = vmatpush2.bf16.xpose.msra.mxu0 0
        %1409 = vmatprep.subr.bf16.mxu0 0
        %1410 = vmatpush2.bf16.xpose.msra.mxu0 0
        %1411 = vmatprep.subr.bf16.mxu0 0
        %1412 = vmatpush2.bf16.xpose.msra.mxu0 0
        %1413 = vmatprep.subr.bf16.mxu0 0
        %1414 = vmatpush2.bf16.xpose.msra.mxu0 0
        %1415 = vmatprep.subr.bf16.mxu0 0
        %1416 = vmatpush2.bf16.xpose.msra.mxu0 0
        %1417 = vmatprep.subr.bf16.mxu0 0
        %1418 = vmatpush2.bf16.xpose.msra.mxu0 0
        %1419 = vmatprep.mubr.bf16.mxu0 0
        %1420 = vmatmul.mubr.bf16.gmra.mxu0 %v1382
        %v1421 = vpop.f32.mrf.mxu0
        %v1422 = vadd.f32 %v842, %v1421
        %v1423 = vpop.f32.mrf.mxu0
        %v1424 = vpop.f32.mrf.mxu0
        %v1425 = vpop.f32.mrf.mxu0
        %1426 = vdwg.mxu0
        %v1428 = vsel %vm405, %v545, 0
        %v1431 = vsel %vm405, %v678, 0
        %1433 = vmatprep.subr.bf16.mxu0 0
        %1434 = vmatpush1.bf16.xpose.msra.mxu0 0
        %1435 = vmatprep.subr.bf16.mxu0 0
        %1436 = vmatpush1.bf16.xpose.msra.mxu0 0
        %1437 = vmatprep.subr.bf16.mxu0 0
        %1438 = vmatpush1.bf16.xpose.msra.mxu0 0
        %1439 = vmatprep.subr.bf16.mxu0 0
        %1440 = vmatpush1.bf16.xpose.msra.mxu0 0
        %1441 = vmatprep.subr.bf16.mxu0 0
        %1442 = vmatpush1.bf16.xpose.msra.mxu0 0
        %1443 = vmatprep.subr.bf16.mxu0 0
        %1444 = vmatpush1.bf16.xpose.msra.mxu0 0
        %1445 = vmatprep.subr.bf16.mxu0 0
        %1446 = vmatpush1.bf16.xpose.msra.mxu0 0
        %1447 = vmatprep.subr.bf16.mxu0 0
        %1448 = vmatpush1.bf16.xpose.msra.mxu0 %v1431
        %1449 = vmatprep.subr.bf16.mxu0 0
        %1450 = vmatpush2.bf16.xpose.msra.mxu0 0
        %1451 = vmatprep.subr.bf16.mxu0 0
        %1452 = vmatpush2.bf16.xpose.msra.mxu0 0
        %1453 = vmatprep.subr.bf16.mxu0 0
        %1454 = vmatpush2.bf16.xpose.msra.mxu0 0
        %1455 = vmatprep.subr.bf16.mxu0 0
        %1456 = vmatpush2.bf16.xpose.msra.mxu0 0
        %1457 = vmatprep.subr.bf16.mxu0 0
        %1458 = vmatpush2.bf16.xpose.msra.mxu0 0
        %1459 = vmatprep.subr.bf16.mxu0 0
        %1460 = vmatpush2.bf16.xpose.msra.mxu0 0
        %1461 = vmatprep.subr.bf16.mxu0 0
        %1462 = vmatpush2.bf16.xpose.msra.mxu0 0
        %1463 = vmatprep.subr.bf16.mxu0 0
        %1464 = vmatpush2.bf16.xpose.msra.mxu0 0
        %1465 = vmatprep.mubr.bf16.mxu0 0
        %1466 = vmatmul.mubr.bf16.gmra.mxu0 %v1428
        %v1467 = vpop.f32.mrf.mxu0
        %v1468 = vadd.f32 %v846, %v1467
        %v1469 = vpop.f32.mrf.mxu0
        %v1470 = vpop.f32.mrf.mxu0
        %v1471 = vpop.f32.mrf.mxu0
        %1472 = vdwg.mxu0
        %v1474 = vsel %vm405, %v546, 0
        %v1477 = vsel %vm405, %v679, 0
        %1479 = vmatprep.subr.bf16.mxu0 0
        %1480 = vmatpush1.bf16.xpose.msra.mxu0 0
        %1481 = vmatprep.subr.bf16.mxu0 0
        %1482 = vmatpush1.bf16.xpose.msra.mxu0 0
        %1483 = vmatprep.subr.bf16.mxu0 0
        %1484 = vmatpush1.bf16.xpose.msra.mxu0 0
        %1485 = vmatprep.subr.bf16.mxu0 0
        %1486 = vmatpush1.bf16.xpose.msra.mxu0 0
        %1487 = vmatprep.subr.bf16.mxu0 0
        %1488 = vmatpush1.bf16.xpose.msra.mxu0 0
        %1489 = vmatprep.subr.bf16.mxu0 0
        %1490 = vmatpush1.bf16.xpose.msra.mxu0 0
        %1491 = vmatprep.subr.bf16.mxu0 0
        %1492 = vmatpush1.bf16.xpose.msra.mxu0 0
        %1493 = vmatprep.subr.bf16.mxu0 0
        %1494 = vmatpush1.bf16.xpose.msra.mxu0 %v1477
        %1495 = vmatprep.subr.bf16.mxu0 0
        %1496 = vmatpush2.bf16.xpose.msra.mxu0 0
        %1497 = vmatprep.subr.bf16.mxu0 0
        %1498 = vmatpush2.bf16.xpose.msra.mxu0 0
        %1499 = vmatprep.subr.bf16.mxu0 0
        %1500 = vmatpush2.bf16.xpose.msra.mxu0 0
        %1501 = vmatprep.subr.bf16.mxu0 0
        %1502 = vmatpush2.bf16.xpose.msra.mxu0 0
        %1503 = vmatprep.subr.bf16.mxu0 0
        %1504 = vmatpush2.bf16.xpose.msra.mxu0 0
        %1505 = vmatprep.subr.bf16.mxu0 0
        %1506 = vmatpush2.bf16.xpose.msra.mxu0 0
        %1507 = vmatprep.subr.bf16.mxu0 0
        %1508 = vmatpush2.bf16.xpose.msra.mxu0 0
        %1509 = vmatprep.subr.bf16.mxu0 0
        %1510 = vmatpush2.bf16.xpose.msra.mxu0 0
        %1511 = vmatprep.mubr.bf16.mxu0 0
        %1512 = vmatmul.mubr.bf16.gmra.mxu0 %v1474
        %v1513 = vpop.f32.mrf.mxu0
        %v1514 = vadd.f32 %v850, %v1513
        %v1515 = vpop.f32.mrf.mxu0
        %v1516 = vpop.f32.mrf.mxu0
        %v1517 = vpop.f32.mrf.mxu0
        %1518 = vdwg.mxu0
        %v1520 = vsel %vm405, %v547, 0
        %v1523 = vsel %vm405, %v680, 0
        %1525 = vmatprep.subr.bf16.mxu0 0
        %1526 = vmatpush1.bf16.xpose.msra.mxu0 0
        %1527 = vmatprep.subr.bf16.mxu0 0
        %1528 = vmatpush1.bf16.xpose.msra.mxu0 0
        %1529 = vmatprep.subr.bf16.mxu0 0
        %1530 = vmatpush1.bf16.xpose.msra.mxu0 0
        %1531 = vmatprep.subr.bf16.mxu0 0
        %1532 = vmatpush1.bf16.xpose.msra.mxu0 0
        %1533 = vmatprep.subr.bf16.mxu0 0
        %1534 = vmatpush1.bf16.xpose.msra.mxu0 0
        %1535 = vmatprep.subr.bf16.mxu0 0
        %1536 = vmatpush1.bf16.xpose.msra.mxu0 0
        %1537 = vmatprep.subr.bf16.mxu0 0
        %1538 = vmatpush1.bf16.xpose.msra.mxu0 0
        %1539 = vmatprep.subr.bf16.mxu0 0
        %1540 = vmatpush1.bf16.xpose.msra.mxu0 %v1523
        %1541 = vmatprep.subr.bf16.mxu0 0
        %1542 = vmatpush2.bf16.xpose.msra.mxu0 0
        %1543 = vmatprep.subr.bf16.mxu0 0
        %1544 = vmatpush2.bf16.xpose.msra.mxu0 0
        %1545 = vmatprep.subr.bf16.mxu0 0
        %1546 = vmatpush2.bf16.xpose.msra.mxu0 0
        %1547 = vmatprep.subr.bf16.mxu0 0
        %1548 = vmatpush2.bf16.xpose.msra.mxu0 0
        %1549 = vmatprep.subr.bf16.mxu0 0
        %1550 = vmatpush2.bf16.xpose.msra.mxu0 0
        %1551 = vmatprep.subr.bf16.mxu0 0
        %1552 = vmatpush2.bf16.xpose.msra.mxu0 0
        %1553 = vmatprep.subr.bf16.mxu0 0
        %1554 = vmatpush2.bf16.xpose.msra.mxu0 0
        %1555 = vmatprep.subr.bf16.mxu0 0
        %1556 = vmatpush2.bf16.xpose.msra.mxu0 0
        %1557 = vmatprep.mubr.bf16.mxu0 0
        %1558 = vmatmul.mubr.bf16.gmra.mxu0 %v1520
        %v1559 = vpop.f32.mrf.mxu0
        %v1560 = vadd.f32 %v854, %v1559
        %v1561 = vpop.f32.mrf.mxu0
        %v1562 = vpop.f32.mrf.mxu0
        %v1563 = vpop.f32.mrf.mxu0
        %1564 = vdwg.mxu0
        %v1566 = vsel %vm405, %v548, 0
        %v1569 = vsel %vm405, %v681, 0
        %1571 = vmatprep.subr.bf16.mxu0 0
        %1572 = vmatpush1.bf16.xpose.msra.mxu0 0
        %1573 = vmatprep.subr.bf16.mxu0 0
        %1574 = vmatpush1.bf16.xpose.msra.mxu0 0
        %1575 = vmatprep.subr.bf16.mxu0 0
        %1576 = vmatpush1.bf16.xpose.msra.mxu0 0
        %1577 = vmatprep.subr.bf16.mxu0 0
        %1578 = vmatpush1.bf16.xpose.msra.mxu0 0
        %1579 = vmatprep.subr.bf16.mxu0 0
        %1580 = vmatpush1.bf16.xpose.msra.mxu0 0
        %1581 = vmatprep.subr.bf16.mxu0 0
        %1582 = vmatpush1.bf16.xpose.msra.mxu0 0
        %1583 = vmatprep.subr.bf16.mxu0 0
        %1584 = vmatpush1.bf16.xpose.msra.mxu0 0
        %1585 = vmatprep.subr.bf16.mxu0 0
        %1586 = vmatpush1.bf16.xpose.msra.mxu0 %v1569
        %1587 = vmatprep.subr.bf16.mxu0 0
        %1588 = vmatpush2.bf16.xpose.msra.mxu0 0
        %1589 = vmatprep.subr.bf16.mxu0 0
        %1590 = vmatpush2.bf16.xpose.msra.mxu0 0
        %1591 = vmatprep.subr.bf16.mxu0 0
        %1592 = vmatpush2.bf16.xpose.msra.mxu0 0
        %1593 = vmatprep.subr.bf16.mxu0 0
        %1594 = vmatpush2.bf16.xpose.msra.mxu0 0
        %1595 = vmatprep.subr.bf16.mxu0 0
        %1596 = vmatpush2.bf16.xpose.msra.mxu0 0
        %1597 = vmatprep.subr.bf16.mxu0 0
        %1598 = vmatpush2.bf16.xpose.msra.mxu0 0
        %1599 = vmatprep.subr.bf16.mxu0 0
        %1600 = vmatpush2.bf16.xpose.msra.mxu0 0
        %1601 = vmatprep.subr.bf16.mxu0 0
        %1602 = vmatpush2.bf16.xpose.msra.mxu0 0
        %1603 = vmatprep.mubr.bf16.mxu0 0
        %1604 = vmatmul.mubr.bf16.gmra.mxu0 %v1566
        %v1605 = vpop.f32.mrf.mxu0
        %v1606 = vadd.f32 %v858, %v1605
        %v1607 = vpop.f32.mrf.mxu0
        %v1608 = vpop.f32.mrf.mxu0
        %v1609 = vpop.f32.mrf.mxu0
        %1610 = vdwg.mxu0
        %v1611 = vsel %vm688, %v916, -inf
        %1612 = vmax.xlane.f32.xlu0 %v1611
        %v1613 = vpop.xlane.xlu0 %1612
        %v1614 = vsel %vm688, %v962, -inf
        %1615 = vmax.xlane.f32.xlu0 %v1614
        %v1616 = vpop.xlane.xlu0 %1615
        %v1617 = vsel %vm688, %v1008, -inf
        %1618 = vmax.xlane.f32.xlu0 %v1617
        %v1619 = vpop.xlane.xlu0 %1618
        %v1620 = vsel %vm688, %v1054, -inf
        %1621 = vmax.xlane.f32.xlu0 %v1620
        %v1622 = vpop.xlane.xlu0 %1621
        %v1623 = vsel %vm688, %v1100, -inf
        %1624 = vmax.xlane.f32.xlu0 %v1623
        %v1625 = vpop.xlane.xlu0 %1624
        %v1626 = vsel %vm688, %v1146, -inf
        %1627 = vmax.xlane.f32.xlu0 %v1626
        %v1628 = vpop.xlane.xlu0 %1627
        %v1629 = vsel %vm688, %v1192, -inf
        %1630 = vmax.xlane.f32.xlu0 %v1629
        %v1631 = vpop.xlane.xlu0 %1630
        %v1632 = vsel %vm688, %v1238, -inf
        %1633 = vmax.xlane.f32.xlu0 %v1632
        %v1634 = vpop.xlane.xlu0 %1633
        %v1635 = vsel %vm688, %v1284, -inf
        %1636 = vmax.xlane.f32.xlu0 %v1635
        %v1637 = vpop.xlane.xlu0 %1636
        %v1638 = vsel %vm688, %v1330, -inf
        %1639 = vmax.xlane.f32.xlu0 %v1638
        %v1640 = vpop.xlane.xlu0 %1639
        %v1641 = vsel %vm688, %v1376, -inf
        %1642 = vmax.xlane.f32.xlu0 %v1641
        %v1643 = vpop.xlane.xlu0 %1642
        %v1644 = vsel %vm688, %v1422, -inf
        %1645 = vmax.xlane.f32.xlu0 %v1644
        %v1646 = vpop.xlane.xlu0 %1645
        %v1647 = vsel %vm688, %v1468, -inf
        %1648 = vmax.xlane.f32.xlu0 %v1647
        %v1649 = vpop.xlane.xlu0 %1648
        %v1650 = vsel %vm688, %v1514, -inf
        %1651 = vmax.xlane.f32.xlu0 %v1650
        %v1652 = vpop.xlane.xlu0 %1651
        %v1653 = vsel %vm688, %v1560, -inf
        %1654 = vmax.xlane.f32.xlu0 %v1653
        %v1655 = vpop.xlane.xlu0 %1654
        %v1656 = vsel %vm688, %v1606, -inf
        %1657 = vmax.xlane.f32.xlu0 %v1656
        %v1658 = vpop.xlane.xlu0 %1657
        %v1659 = vsub.f32 %v916, %v1613
        %v1660 = vsub.f32 %v962, %v1616
        %v1661 = vsub.f32 %v1008, %v1619
        %v1662 = vsub.f32 %v1054, %v1622
        %v1663 = vsub.f32 %v1100, %v1625
        %v1664 = vsub.f32 %v1146, %v1628
        %v1665 = vsub.f32 %v1192, %v1631
        %v1666 = vsub.f32 %v1238, %v1634
        %v1667 = vsub.f32 %v1284, %v1637
        %v1668 = vsub.f32 %v1330, %v1640
        %v1669 = vsub.f32 %v1376, %v1643
        %v1670 = vsub.f32 %v1422, %v1646
        %v1671 = vsub.f32 %v1468, %v1649
        %v1672 = vsub.f32 %v1514, %v1652
        %v1673 = vsub.f32 %v1560, %v1655
        %v1674 = vsub.f32 %v1606, %v1658
        %v1675 = vmul.f32 %v1659, 1.442695
        %v1676 = vpow.pop %v1675
        %v1677 = vmul.f32 %v1660, 1.442695
        %v1678 = vpow.pop %v1677
        %v1679 = vmul.f32 %v1661, 1.442695
        %v1680 = vpow.pop %v1679
        %v1681 = vmul.f32 %v1662, 1.442695
        %v1682 = vpow.pop %v1681
        %v1683 = vmul.f32 %v1663, 1.442695
        %v1684 = vpow.pop %v1683
        %v1685 = vmul.f32 %v1664, 1.442695
        %v1686 = vpow.pop %v1685
        %v1687 = vmul.f32 %v1665, 1.442695
        %v1688 = vpow.pop %v1687
        %v1689 = vmul.f32 %v1666, 1.442695
        %v1690 = vpow.pop %v1689
        %v1691 = vmul.f32 %v1667, 1.442695
        %v1692 = vpow.pop %v1691
        %v1693 = vmul.f32 %v1668, 1.442695
        %v1694 = vpow.pop %v1693
        %v1695 = vmul.f32 %v1669, 1.442695
        %v1696 = vpow.pop %v1695
        %v1697 = vmul.f32 %v1670, 1.442695
        %v1698 = vpow.pop %v1697
        %v1699 = vmul.f32 %v1671, 1.442695
        %v1700 = vpow.pop %v1699
        %v1701 = vmul.f32 %v1672, 1.442695
        %v1702 = vpow.pop %v1701
        %v1703 = vmul.f32 %v1673, 1.442695
        %v1704 = vpow.pop %v1703
        %v1705 = vmul.f32 %v1674, 1.442695
        %v1706 = vpow.pop %v1705
        %v1707 = vsel %vm688, %v1676, 0.0
        %1708 = vadd.xlane.f32.xlu0 %v1707
        %v1709 = vpop.xlane.xlu0 %1708
        %v1710 = vsel %vm688, %v1678, 0.0
        %1711 = vadd.xlane.f32.xlu0 %v1710
        %v1712 = vpop.xlane.xlu0 %1711
        %v1713 = vsel %vm688, %v1680, 0.0
        %1714 = vadd.xlane.f32.xlu0 %v1713
        %v1715 = vpop.xlane.xlu0 %1714
        %v1716 = vsel %vm688, %v1682, 0.0
        %1717 = vadd.xlane.f32.xlu0 %v1716
        %v1718 = vpop.xlane.xlu0 %1717
        %v1719 = vsel %vm688, %v1684, 0.0
        %1720 = vadd.xlane.f32.xlu0 %v1719
        %v1721 = vpop.xlane.xlu0 %1720
        %v1722 = vsel %vm688, %v1686, 0.0
        %1723 = vadd.xlane.f32.xlu0 %v1722
        %v1724 = vpop.xlane.xlu0 %1723
        %v1725 = vsel %vm688, %v1688, 0.0
        %1726 = vadd.xlane.f32.xlu0 %v1725
        %v1727 = vpop.xlane.xlu0 %1726
        %v1728 = vsel %vm688, %v1690, 0.0
        %1729 = vadd.xlane.f32.xlu0 %v1728
        %v1730 = vpop.xlane.xlu0 %1729
        %v1731 = vsel %vm688, %v1692, 0.0
        %1732 = vadd.xlane.f32.xlu0 %v1731
        %v1733 = vpop.xlane.xlu0 %1732
        %v1734 = vsel %vm688, %v1694, 0.0
        %1735 = vadd.xlane.f32.xlu0 %v1734
        %v1736 = vpop.xlane.xlu0 %1735
        %v1737 = vsel %vm688, %v1696, 0.0
        %1738 = vadd.xlane.f32.xlu0 %v1737
        %v1739 = vpop.xlane.xlu0 %1738
        %v1740 = vsel %vm688, %v1698, 0.0
        %1741 = vadd.xlane.f32.xlu0 %v1740
        %v1742 = vpop.xlane.xlu0 %1741
        %v1743 = vsel %vm688, %v1700, 0.0
        %1744 = vadd.xlane.f32.xlu0 %v1743
        %v1745 = vpop.xlane.xlu0 %1744
        %v1746 = vsel %vm688, %v1702, 0.0
        %1747 = vadd.xlane.f32.xlu0 %v1746
        %v1748 = vpop.xlane.xlu0 %1747
        %v1749 = vsel %vm688, %v1704, 0.0
        %1750 = vadd.xlane.f32.xlu0 %v1749
        %v1751 = vpop.xlane.xlu0 %1750
        %v1752 = vsel %vm688, %v1706, 0.0
        %1753 = vadd.xlane.f32.xlu0 %v1752
        %v1754 = vpop.xlane.xlu0 %1753
        %v1755 = vlaneseq
        %v1756 = vshrl.u32 %v1755, 7
        %v1757 = vsub.s32 0, %v1756
        %v1758 = vrot.slane %v686, %v1757
        %1760 = vbcast.lane.b32.xlu0 %v1758, 256
        %v1761 = vpop.permute.xlu0 %1760
        %v1762 = vlaneseq
        %v1763 = vshrl.u32 %v1762, 7
        %v1764 = vsub.s32 1, %v1763
        %v1765 = vrot.slane %v686, %v1764
        %1767 = vbcast.lane.b32.xlu0 %v1765, 256
        %v1768 = vpop.permute.xlu0 %1767
        %v1769 = vlaneseq
        %v1770 = vshrl.u32 %v1769, 7
        %v1771 = vsub.s32 2, %v1770
        %v1772 = vrot.slane %v686, %v1771
        %1774 = vbcast.lane.b32.xlu0 %v1772, 256
        %v1775 = vpop.permute.xlu0 %1774
        %v1776 = vlaneseq
        %v1777 = vshrl.u32 %v1776, 7
        %v1778 = vsub.s32 3, %v1777
        %v1779 = vrot.slane %v686, %v1778
        %1781 = vbcast.lane.b32.xlu0 %v1779, 256
        %v1782 = vpop.permute.xlu0 %1781
        %v1783 = vlaneseq
        %v1784 = vshrl.u32 %v1783, 7
        %v1785 = vsub.s32 4, %v1784
        %v1786 = vrot.slane %v686, %v1785
        %1788 = vbcast.lane.b32.xlu0 %v1786, 256
        %v1789 = vpop.permute.xlu0 %1788
        %v1790 = vlaneseq
        %v1791 = vshrl.u32 %v1790, 7
        %v1792 = vsub.s32 5, %v1791
        %v1793 = vrot.slane %v686, %v1792
        %1795 = vbcast.lane.b32.xlu0 %v1793, 256
        %v1796 = vpop.permute.xlu0 %1795
        %v1797 = vlaneseq
        %v1798 = vshrl.u32 %v1797, 7
        %v1799 = vsub.s32 6, %v1798
        %v1800 = vrot.slane %v686, %v1799
        %1802 = vbcast.lane.b32.xlu0 %v1800, 256
        %v1803 = vpop.permute.xlu0 %1802
        %v1804 = vlaneseq
        %v1805 = vshrl.u32 %v1804, 7
        %v1806 = vsub.s32 7, %v1805
        %v1807 = vrot.slane %v686, %v1806
        %1809 = vbcast.lane.b32.xlu0 %v1807, 256
        %v1810 = vpop.permute.xlu0 %1809
        %v1811 = vlaneseq
        %v1812 = vshrl.u32 %v1811, 7
        %v1813 = vsub.s32 0, %v1812
        %v1814 = vrot.slane %v687, %v1813
        %1816 = vbcast.lane.b32.xlu0 %v1814, 256
        %v1817 = vpop.permute.xlu0 %1816
        %v1818 = vlaneseq
        %v1819 = vshrl.u32 %v1818, 7
        %v1820 = vsub.s32 1, %v1819
        %v1821 = vrot.slane %v687, %v1820
        %1823 = vbcast.lane.b32.xlu0 %v1821, 256
        %v1824 = vpop.permute.xlu0 %1823
        %v1825 = vlaneseq
        %v1826 = vshrl.u32 %v1825, 7
        %v1827 = vsub.s32 2, %v1826
        %v1828 = vrot.slane %v687, %v1827
        %1830 = vbcast.lane.b32.xlu0 %v1828, 256
        %v1831 = vpop.permute.xlu0 %1830
        %v1832 = vlaneseq
        %v1833 = vshrl.u32 %v1832, 7
        %v1834 = vsub.s32 3, %v1833
        %v1835 = vrot.slane %v687, %v1834
        %1837 = vbcast.lane.b32.xlu0 %v1835, 256
        %v1838 = vpop.permute.xlu0 %1837
        %v1839 = vlaneseq
        %v1840 = vshrl.u32 %v1839, 7
        %v1841 = vsub.s32 4, %v1840
        %v1842 = vrot.slane %v687, %v1841
        %1844 = vbcast.lane.b32.xlu0 %v1842, 256
        %v1845 = vpop.permute.xlu0 %1844
        %v1846 = vlaneseq
        %v1847 = vshrl.u32 %v1846, 7
        %v1848 = vsub.s32 5, %v1847
        %v1849 = vrot.slane %v687, %v1848
        %1851 = vbcast.lane.b32.xlu0 %v1849, 256
        %v1852 = vpop.permute.xlu0 %1851
        %v1853 = vlaneseq
        %v1854 = vshrl.u32 %v1853, 7
        %v1855 = vsub.s32 6, %v1854
        %v1856 = vrot.slane %v687, %v1855
        %1858 = vbcast.lane.b32.xlu0 %v1856, 256
        %v1859 = vpop.permute.xlu0 %1858
        %v1860 = vlaneseq
        %v1861 = vshrl.u32 %v1860, 7
        %v1862 = vsub.s32 7, %v1861
        %v1863 = vrot.slane %v687, %v1862
        %1865 = vbcast.lane.b32.xlu0 %v1863, 256
        %v1866 = vpop.permute.xlu0 %1865
        %v1867 = vrcp.pop %v1709
        %v1868 = vrcp.pop %v1712
        %v1869 = vrcp.pop %v1715
        %v1870 = vrcp.pop %v1718
        %v1871 = vrcp.pop %v1721
        %v1872 = vrcp.pop %v1724
        %v1873 = vrcp.pop %v1727
        %v1874 = vrcp.pop %v1730
        %v1875 = vrcp.pop %v1733
        %v1876 = vrcp.pop %v1736
        %v1877 = vrcp.pop %v1739
        %v1878 = vrcp.pop %v1742
        %v1879 = vrcp.pop %v1745
        %v1880 = vrcp.pop %v1748
        %v1881 = vrcp.pop %v1751
        %v1882 = vrcp.pop %v1754
        %v1883 = vmul.f32 %v1761, %v1867
        %v1884 = vmul.f32 %v1768, %v1868
        %v1885 = vmul.f32 %v1775, %v1869
        %v1886 = vmul.f32 %v1782, %v1870
        %v1887 = vmul.f32 %v1789, %v1871
        %v1888 = vmul.f32 %v1796, %v1872
        %v1889 = vmul.f32 %v1803, %v1873
        %v1890 = vmul.f32 %v1810, %v1874
        %v1891 = vmul.f32 %v1817, %v1875
        %v1892 = vmul.f32 %v1824, %v1876
        %v1893 = vmul.f32 %v1831, %v1877
        %v1894 = vmul.f32 %v1838, %v1878
        %v1895 = vmul.f32 %v1845, %v1879
        %v1896 = vmul.f32 %v1852, %v1880
        %v1897 = vmul.f32 %v1859, %v1881
        %v1898 = vmul.f32 %v1866, %v1882
        %v1899 = vmul.f32 %v1676, %v1883
        %v1900 = vmul.f32 %v1678, %v1884
        %v1901 = vmul.f32 %v1680, %v1885
        %v1902 = vmul.f32 %v1682, %v1886
        %v1903 = vmul.f32 %v1684, %v1887
        %v1904 = vmul.f32 %v1686, %v1888
        %v1905 = vmul.f32 %v1688, %v1889
        %v1906 = vmul.f32 %v1690, %v1890
        %v1907 = vmul.f32 %v1692, %v1891
        %v1908 = vmul.f32 %v1694, %v1892
        %v1909 = vmul.f32 %v1696, %v1893
        %v1910 = vmul.f32 %v1698, %v1894
        %v1911 = vmul.f32 %v1700, %v1895
        %v1912 = vmul.f32 %v1702, %v1896
        %v1913 = vmul.f32 %v1704, %v1897
        %v1914 = vmul.f32 %v1706, %v1898
        %v1915 = vsel %vm688, %v1899, 0.0
        %v1916 = vrot.slane %v1915, 4
        %v1917 = vadd.f32 %v1915, %v1916
        %v1918 = vrot.slane %v1917, 2
        %v1919 = vadd.f32 %v1917, %v1918
        %v1920 = vrot.slane %v1919, 1
        %v1921 = vadd.f32 %v1919, %v1920
        %v1922 = vsel %vm688, %v1900, 0.0
        %v1923 = vrot.slane %v1922, 4
        %v1924 = vadd.f32 %v1922, %v1923
        %v1925 = vrot.slane %v1924, 2
        %v1926 = vadd.f32 %v1924, %v1925
        %v1927 = vrot.slane %v1926, 1
        %v1928 = vadd.f32 %v1926, %v1927
        %v1929 = vsel %vm688, %v1901, 0.0
        %v1930 = vrot.slane %v1929, 4
        %v1931 = vadd.f32 %v1929, %v1930
        %v1932 = vrot.slane %v1931, 2
        %v1933 = vadd.f32 %v1931, %v1932
        %v1934 = vrot.slane %v1933, 1
        %v1935 = vadd.f32 %v1933, %v1934
        %v1936 = vsel %vm688, %v1902, 0.0
        %v1937 = vrot.slane %v1936, 4
        %v1938 = vadd.f32 %v1936, %v1937
        %v1939 = vrot.slane %v1938, 2
        %v1940 = vadd.f32 %v1938, %v1939
        %v1941 = vrot.slane %v1940, 1
        %v1942 = vadd.f32 %v1940, %v1941
        %v1943 = vsel %vm688, %v1903, 0.0
        %v1944 = vrot.slane %v1943, 4
        %v1945 = vadd.f32 %v1943, %v1944
        %v1946 = vrot.slane %v1945, 2
        %v1947 = vadd.f32 %v1945, %v1946
        %v1948 = vrot.slane %v1947, 1
        %v1949 = vadd.f32 %v1947, %v1948
        %v1950 = vsel %vm688, %v1904, 0.0
        %v1951 = vrot.slane %v1950, 4
        %v1952 = vadd.f32 %v1950, %v1951
        %v1953 = vrot.slane %v1952, 2
        %v1954 = vadd.f32 %v1952, %v1953
        %v1955 = vrot.slane %v1954, 1
        %v1956 = vadd.f32 %v1954, %v1955
        %v1957 = vsel %vm688, %v1905, 0.0
        %v1958 = vrot.slane %v1957, 4
        %v1959 = vadd.f32 %v1957, %v1958
        %v1960 = vrot.slane %v1959, 2
        %v1961 = vadd.f32 %v1959, %v1960
        %v1962 = vrot.slane %v1961, 1
        %v1963 = vadd.f32 %v1961, %v1962
        %v1964 = vsel %vm688, %v1906, 0.0
        %v1965 = vrot.slane %v1964, 4
        %v1966 = vadd.f32 %v1964, %v1965
        %v1967 = vrot.slane %v1966, 2
        %v1968 = vadd.f32 %v1966, %v1967
        %v1969 = vrot.slane %v1968, 1
        %v1970 = vadd.f32 %v1968, %v1969
        %v1971 = vsel %vm688, %v1907, 0.0
        %v1972 = vrot.slane %v1971, 4
        %v1973 = vadd.f32 %v1971, %v1972
        %v1974 = vrot.slane %v1973, 2
        %v1975 = vadd.f32 %v1973, %v1974
        %v1976 = vrot.slane %v1975, 1
        %v1977 = vadd.f32 %v1975, %v1976
        %v1978 = vsel %vm688, %v1908, 0.0
        %v1979 = vrot.slane %v1978, 4
        %v1980 = vadd.f32 %v1978, %v1979
        %v1981 = vrot.slane %v1980, 2
        %v1982 = vadd.f32 %v1980, %v1981
        %v1983 = vrot.slane %v1982, 1
        %v1984 = vadd.f32 %v1982, %v1983
        %v1985 = vsel %vm688, %v1909, 0.0
        %v1986 = vrot.slane %v1985, 4
        %v1987 = vadd.f32 %v1985, %v1986
        %v1988 = vrot.slane %v1987, 2
        %v1989 = vadd.f32 %v1987, %v1988
        %v1990 = vrot.slane %v1989, 1
        %v1991 = vadd.f32 %v1989, %v1990
        %v1992 = vsel %vm688, %v1910, 0.0
        %v1993 = vrot.slane %v1992, 4
        %v1994 = vadd.f32 %v1992, %v1993
        %v1995 = vrot.slane %v1994, 2
        %v1996 = vadd.f32 %v1994, %v1995
        %v1997 = vrot.slane %v1996, 1
        %v1998 = vadd.f32 %v1996, %v1997
        %v1999 = vsel %vm688, %v1911, 0.0
        %v2000 = vrot.slane %v1999, 4
        %v2001 = vadd.f32 %v1999, %v2000
        %v2002 = vrot.slane %v2001, 2
        %v2003 = vadd.f32 %v2001, %v2002
        %v2004 = vrot.slane %v2003, 1
        %v2005 = vadd.f32 %v2003, %v2004
        %v2006 = vsel %vm688, %v1912, 0.0
        %v2007 = vrot.slane %v2006, 4
        %v2008 = vadd.f32 %v2006, %v2007
        %v2009 = vrot.slane %v2008, 2
        %v2010 = vadd.f32 %v2008, %v2009
        %v2011 = vrot.slane %v2010, 1
        %v2012 = vadd.f32 %v2010, %v2011
        %v2013 = vsel %vm688, %v1913, 0.0
        %v2014 = vrot.slane %v2013, 4
        %v2015 = vadd.f32 %v2013, %v2014
        %v2016 = vrot.slane %v2015, 2
        %v2017 = vadd.f32 %v2015, %v2016
        %v2018 = vrot.slane %v2017, 1
        %v2019 = vadd.f32 %v2017, %v2018
        %v2020 = vsel %vm688, %v1914, 0.0
        %v2021 = vrot.slane %v2020, 4
        %v2022 = vadd.f32 %v2020, %v2021
        %v2023 = vrot.slane %v2022, 2
        %v2024 = vadd.f32 %v2022, %v2023
        %v2025 = vrot.slane %v2024, 1
        %v2026 = vadd.f32 %v2024, %v2025
        %v2027 = vpack.c.bf16 %v1921, %v1921
        %v2028 = vpack.c.bf16 %v1928, %v1928
        %v2029 = vpack.c.bf16 %v1935, %v1935
        %v2030 = vpack.c.bf16 %v1942, %v1942
        %v2031 = vpack.c.bf16 %v1949, %v1949
        %v2032 = vpack.c.bf16 %v1956, %v1956
        %v2033 = vpack.c.bf16 %v1963, %v1963
        %v2034 = vpack.c.bf16 %v1970, %v1970
        %v2035 = vpack.c.bf16 %v1977, %v1977
        %v2036 = vpack.c.bf16 %v1984, %v1984
        %v2037 = vpack.c.bf16 %v1991, %v1991
        %v2038 = vpack.c.bf16 %v1998, %v1998
        %v2039 = vpack.c.bf16 %v2005, %v2005
        %v2040 = vpack.c.bf16 %v2012, %v2012
        %v2041 = vpack.c.bf16 %v2019, %v2019
        %v2042 = vpack.c.bf16 %v2026, %v2026
        %v2044 = vsel %vm688, %v2027, 0
        %vm2046 = vcmask 1043456
        %v2048 = vsel %vm2046, %v333, 0
        %2050 = vmatprep.subr.bf16.mxu0 0
        %2051 = vmatpush1.bf16.msra.mxu0 0
        %2052 = vmatprep.subr.bf16.mxu0 0
        %2053 = vmatpush1.bf16.msra.mxu0 0
        %2054 = vmatprep.subr.bf16.mxu0 0
        %2055 = vmatpush1.bf16.msra.mxu0 0
        %2056 = vmatprep.subr.bf16.mxu0 0
        %2057 = vmatpush1.bf16.msra.mxu0 0
        %2058 = vmatprep.subr.bf16.mxu0 0
        %2059 = vmatpush1.bf16.msra.mxu0 0
        %2060 = vmatprep.subr.bf16.mxu0 0
        %2061 = vmatpush1.bf16.msra.mxu0 0
        %2062 = vmatprep.subr.bf16.mxu0 0
        %2063 = vmatpush1.bf16.msra.mxu0 0
        %2064 = vmatprep.subr.bf16.mxu0 0
        %2065 = vmatpush1.bf16.msra.mxu0 %v2048
        %2066 = vmatprep.subr.bf16.mxu0 0
        %2067 = vmatpush2.bf16.msra.mxu0 0
        %2068 = vmatprep.subr.bf16.mxu0 0
        %2069 = vmatpush2.bf16.msra.mxu0 0
        %2070 = vmatprep.subr.bf16.mxu0 0
        %2071 = vmatpush2.bf16.msra.mxu0 0
        %2072 = vmatprep.subr.bf16.mxu0 0
        %2073 = vmatpush2.bf16.msra.mxu0 0
        %2074 = vmatprep.subr.bf16.mxu0 0
        %2075 = vmatpush2.bf16.msra.mxu0 0
        %2076 = vmatprep.subr.bf16.mxu0 0
        %2077 = vmatpush2.bf16.msra.mxu0 0
        %2078 = vmatprep.subr.bf16.mxu0 0
        %2079 = vmatpush2.bf16.msra.mxu0 0
        %2080 = vmatprep.subr.bf16.mxu0 0
        %2081 = vmatpush2.bf16.msra.mxu0 0
        %2082 = vmatprep.mubr.bf16.mxu0 0
        %2083 = vmatmul.mubr.bf16.gmra.mxu0 %v2044
        %v2084 = vpop.f32.mrf.mxu0
        %v2085 = vadd.f32 0.0, %v2084
        %v2086 = vpop.f32.mrf.mxu0
        %v2087 = vpop.f32.mrf.mxu0
        %v2088 = vpop.f32.mrf.mxu0
        %2089 = vdwg.mxu0
        %v2091 = vsel %vm688, %v2028, 0
        %v2094 = vsel %vm2046, %v334, 0
        %2096 = vmatprep.subr.bf16.mxu0 0
        %2097 = vmatpush1.bf16.msra.mxu0 0
        %2098 = vmatprep.subr.bf16.mxu0 0
        %2099 = vmatpush1.bf16.msra.mxu0 0
        %2100 = vmatprep.subr.bf16.mxu0 0
        %2101 = vmatpush1.bf16.msra.mxu0 0
        %2102 = vmatprep.subr.bf16.mxu0 0
        %2103 = vmatpush1.bf16.msra.mxu0 0
        %2104 = vmatprep.subr.bf16.mxu0 0
        %2105 = vmatpush1.bf16.msra.mxu0 0
        %2106 = vmatprep.subr.bf16.mxu0 0
        %2107 = vmatpush1.bf16.msra.mxu0 0
        %2108 = vmatprep.subr.bf16.mxu0 0
        %2109 = vmatpush1.bf16.msra.mxu0 0
        %2110 = vmatprep.subr.bf16.mxu0 0
        %2111 = vmatpush1.bf16.msra.mxu0 %v2094
        %2112 = vmatprep.subr.bf16.mxu0 0
        %2113 = vmatpush2.bf16.msra.mxu0 0
        %2114 = vmatprep.subr.bf16.mxu0 0
        %2115 = vmatpush2.bf16.msra.mxu0 0
        %2116 = vmatprep.subr.bf16.mxu0 0
        %2117 = vmatpush2.bf16.msra.mxu0 0
        %2118 = vmatprep.subr.bf16.mxu0 0
        %2119 = vmatpush2.bf16.msra.mxu0 0
        %2120 = vmatprep.subr.bf16.mxu0 0
        %2121 = vmatpush2.bf16.msra.mxu0 0
        %2122 = vmatprep.subr.bf16.mxu0 0
        %2123 = vmatpush2.bf16.msra.mxu0 0
        %2124 = vmatprep.subr.bf16.mxu0 0
        %2125 = vmatpush2.bf16.msra.mxu0 0
        %2126 = vmatprep.subr.bf16.mxu0 0
        %2127 = vmatpush2.bf16.msra.mxu0 0
        %2128 = vmatprep.mubr.bf16.mxu0 0
        %2129 = vmatmul.mubr.bf16.gmra.mxu0 %v2091
        %v2130 = vpop.f32.mrf.mxu0
        %v2131 = vadd.f32 0.0, %v2130
        %v2132 = vpop.f32.mrf.mxu0
        %v2133 = vpop.f32.mrf.mxu0
        %v2134 = vpop.f32.mrf.mxu0
        %2135 = vdwg.mxu0
        %v2137 = vsel %vm688, %v2029, 0
        %v2140 = vsel %vm2046, %v335, 0
        %2142 = vmatprep.subr.bf16.mxu0 0
        %2143 = vmatpush1.bf16.msra.mxu0 0
        %2144 = vmatprep.subr.bf16.mxu0 0
        %2145 = vmatpush1.bf16.msra.mxu0 0
        %2146 = vmatprep.subr.bf16.mxu0 0
        %2147 = vmatpush1.bf16.msra.mxu0 0
        %2148 = vmatprep.subr.bf16.mxu0 0
        %2149 = vmatpush1.bf16.msra.mxu0 0
        %2150 = vmatprep.subr.bf16.mxu0 0
        %2151 = vmatpush1.bf16.msra.mxu0 0
        %2152 = vmatprep.subr.bf16.mxu0 0
        %2153 = vmatpush1.bf16.msra.mxu0 0
        %2154 = vmatprep.subr.bf16.mxu0 0
        %2155 = vmatpush1.bf16.msra.mxu0 0
        %2156 = vmatprep.subr.bf16.mxu0 0
        %2157 = vmatpush1.bf16.msra.mxu0 %v2140
        %2158 = vmatprep.subr.bf16.mxu0 0
        %2159 = vmatpush2.bf16.msra.mxu0 0
        %2160 = vmatprep.subr.bf16.mxu0 0
        %2161 = vmatpush2.bf16.msra.mxu0 0
        %2162 = vmatprep.subr.bf16.mxu0 0
        %2163 = vmatpush2.bf16.msra.mxu0 0
        %2164 = vmatprep.subr.bf16.mxu0 0
        %2165 = vmatpush2.bf16.msra.mxu0 0
        %2166 = vmatprep.subr.bf16.mxu0 0
        %2167 = vmatpush2.bf16.msra.mxu0 0
        %2168 = vmatprep.subr.bf16.mxu0 0
        %2169 = vmatpush2.bf16.msra.mxu0 0
        %2170 = vmatprep.subr.bf16.mxu0 0
        %2171 = vmatpush2.bf16.msra.mxu0 0
        %2172 = vmatprep.subr.bf16.mxu0 0
        %2173 = vmatpush2.bf16.msra.mxu0 0
        %2174 = vmatprep.mubr.bf16.mxu0 0
        %2175 = vmatmul.mubr.bf16.gmra.mxu0 %v2137
        %v2176 = vpop.f32.mrf.mxu0
        %v2177 = vadd.f32 0.0, %v2176
        %v2178 = vpop.f32.mrf.mxu0
        %v2179 = vpop.f32.mrf.mxu0
        %v2180 = vpop.f32.mrf.mxu0
        %2181 = vdwg.mxu0
        %v2183 = vsel %vm688, %v2030, 0
        %v2186 = vsel %vm2046, %v336, 0
        %2188 = vmatprep.subr.bf16.mxu0 0
        %2189 = vmatpush1.bf16.msra.mxu0 0
        %2190 = vmatprep.subr.bf16.mxu0 0
        %2191 = vmatpush1.bf16.msra.mxu0 0
        %2192 = vmatprep.subr.bf16.mxu0 0
        %2193 = vmatpush1.bf16.msra.mxu0 0
        %2194 = vmatprep.subr.bf16.mxu0 0
        %2195 = vmatpush1.bf16.msra.mxu0 0
        %2196 = vmatprep.subr.bf16.mxu0 0
        %2197 = vmatpush1.bf16.msra.mxu0 0
        %2198 = vmatprep.subr.bf16.mxu0 0
        %2199 = vmatpush1.bf16.msra.mxu0 0
        %2200 = vmatprep.subr.bf16.mxu0 0
        %2201 = vmatpush1.bf16.msra.mxu0 0
        %2202 = vmatprep.subr.bf16.mxu0 0
        %2203 = vmatpush1.bf16.msra.mxu0 %v2186
        %2204 = vmatprep.subr.bf16.mxu0 0
        %2205 = vmatpush2.bf16.msra.mxu0 0
        %2206 = vmatprep.subr.bf16.mxu0 0
        %2207 = vmatpush2.bf16.msra.mxu0 0
        %2208 = vmatprep.subr.bf16.mxu0 0
        %2209 = vmatpush2.bf16.msra.mxu0 0
        %2210 = vmatprep.subr.bf16.mxu0 0
        %2211 = vmatpush2.bf16.msra.mxu0 0
        %2212 = vmatprep.subr.bf16.mxu0 0
        %2213 = vmatpush2.bf16.msra.mxu0 0
        %2214 = vmatprep.subr.bf16.mxu0 0
        %2215 = vmatpush2.bf16.msra.mxu0 0
        %2216 = vmatprep.subr.bf16.mxu0 0
        %2217 = vmatpush2.bf16.msra.mxu0 0
        %2218 = vmatprep.subr.bf16.mxu0 0
        %2219 = vmatpush2.bf16.msra.mxu0 0
        %2220 = vmatprep.mubr.bf16.mxu0 0
        %2221 = vmatmul.mubr.bf16.gmra.mxu0 %v2183
        %v2222 = vpop.f32.mrf.mxu0
        %v2223 = vadd.f32 0.0, %v2222
        %v2224 = vpop.f32.mrf.mxu0
        %v2225 = vpop.f32.mrf.mxu0
        %v2226 = vpop.f32.mrf.mxu0
        %2227 = vdwg.mxu0
        %v2229 = vsel %vm688, %v2031, 0
        %v2232 = vsel %vm2046, %v337, 0
        %2234 = vmatprep.subr.bf16.mxu0 0
        %2235 = vmatpush1.bf16.msra.mxu0 0
        %2236 = vmatprep.subr.bf16.mxu0 0
        %2237 = vmatpush1.bf16.msra.mxu0 0
        %2238 = vmatprep.subr.bf16.mxu0 0
        %2239 = vmatpush1.bf16.msra.mxu0 0
        %2240 = vmatprep.subr.bf16.mxu0 0
        %2241 = vmatpush1.bf16.msra.mxu0 0
        %2242 = vmatprep.subr.bf16.mxu0 0
        %2243 = vmatpush1.bf16.msra.mxu0 0
        %2244 = vmatprep.subr.bf16.mxu0 0
        %2245 = vmatpush1.bf16.msra.mxu0 0
        %2246 = vmatprep.subr.bf16.mxu0 0
        %2247 = vmatpush1.bf16.msra.mxu0 0
        %2248 = vmatprep.subr.bf16.mxu0 0
        %2249 = vmatpush1.bf16.msra.mxu0 %v2232
        %2250 = vmatprep.subr.bf16.mxu0 0
        %2251 = vmatpush2.bf16.msra.mxu0 0
        %2252 = vmatprep.subr.bf16.mxu0 0
        %2253 = vmatpush2.bf16.msra.mxu0 0
        %2254 = vmatprep.subr.bf16.mxu0 0
        %2255 = vmatpush2.bf16.msra.mxu0 0
        %2256 = vmatprep.subr.bf16.mxu0 0
        %2257 = vmatpush2.bf16.msra.mxu0 0
        %2258 = vmatprep.subr.bf16.mxu0 0
        %2259 = vmatpush2.bf16.msra.mxu0 0
        %2260 = vmatprep.subr.bf16.mxu0 0
        %2261 = vmatpush2.bf16.msra.mxu0 0
        %2262 = vmatprep.subr.bf16.mxu0 0
        %2263 = vmatpush2.bf16.msra.mxu0 0
        %2264 = vmatprep.subr.bf16.mxu0 0
        %2265 = vmatpush2.bf16.msra.mxu0 0
        %2266 = vmatprep.mubr.bf16.mxu0 0
        %2267 = vmatmul.mubr.bf16.gmra.mxu0 %v2229
        %v2268 = vpop.f32.mrf.mxu0
        %v2269 = vadd.f32 0.0, %v2268
        %v2270 = vpop.f32.mrf.mxu0
        %v2271 = vpop.f32.mrf.mxu0
        %v2272 = vpop.f32.mrf.mxu0
        %2273 = vdwg.mxu0
        %v2275 = vsel %vm688, %v2032, 0
        %v2278 = vsel %vm2046, %v338, 0
        %2280 = vmatprep.subr.bf16.mxu0 0
        %2281 = vmatpush1.bf16.msra.mxu0 0
        %2282 = vmatprep.subr.bf16.mxu0 0
        %2283 = vmatpush1.bf16.msra.mxu0 0
        %2284 = vmatprep.subr.bf16.mxu0 0
        %2285 = vmatpush1.bf16.msra.mxu0 0
        %2286 = vmatprep.subr.bf16.mxu0 0
        %2287 = vmatpush1.bf16.msra.mxu0 0
        %2288 = vmatprep.subr.bf16.mxu0 0
        %2289 = vmatpush1.bf16.msra.mxu0 0
        %2290 = vmatprep.subr.bf16.mxu0 0
        %2291 = vmatpush1.bf16.msra.mxu0 0
        %2292 = vmatprep.subr.bf16.mxu0 0
        %2293 = vmatpush1.bf16.msra.mxu0 0
        %2294 = vmatprep.subr.bf16.mxu0 0
        %2295 = vmatpush1.bf16.msra.mxu0 %v2278
        %2296 = vmatprep.subr.bf16.mxu0 0
        %2297 = vmatpush2.bf16.msra.mxu0 0
        %2298 = vmatprep.subr.bf16.mxu0 0
        %2299 = vmatpush2.bf16.msra.mxu0 0
        %2300 = vmatprep.subr.bf16.mxu0 0
        %2301 = vmatpush2.bf16.msra.mxu0 0
        %2302 = vmatprep.subr.bf16.mxu0 0
        %2303 = vmatpush2.bf16.msra.mxu0 0
        %2304 = vmatprep.subr.bf16.mxu0 0
        %2305 = vmatpush2.bf16.msra.mxu0 0
        %2306 = vmatprep.subr.bf16.mxu0 0
        %2307 = vmatpush2.bf16.msra.mxu0 0
        %2308 = vmatprep.subr.bf16.mxu0 0
        %2309 = vmatpush2.bf16.msra.mxu0 0
        %2310 = vmatprep.subr.bf16.mxu0 0
        %2311 = vmatpush2.bf16.msra.mxu0 0
        %2312 = vmatprep.mubr.bf16.mxu0 0
        %2313 = vmatmul.mubr.bf16.gmra.mxu0 %v2275
        %v2314 = vpop.f32.mrf.mxu0
        %v2315 = vadd.f32 0.0, %v2314
        %v2316 = vpop.f32.mrf.mxu0
        %v2317 = vpop.f32.mrf.mxu0
        %v2318 = vpop.f32.mrf.mxu0
        %2319 = vdwg.mxu0
        %v2321 = vsel %vm688, %v2033, 0
        %v2324 = vsel %vm2046, %v339, 0
        %2326 = vmatprep.subr.bf16.mxu0 0
        %2327 = vmatpush1.bf16.msra.mxu0 0
        %2328 = vmatprep.subr.bf16.mxu0 0
        %2329 = vmatpush1.bf16.msra.mxu0 0
        %2330 = vmatprep.subr.bf16.mxu0 0
        %2331 = vmatpush1.bf16.msra.mxu0 0
        %2332 = vmatprep.subr.bf16.mxu0 0
        %2333 = vmatpush1.bf16.msra.mxu0 0
        %2334 = vmatprep.subr.bf16.mxu0 0
        %2335 = vmatpush1.bf16.msra.mxu0 0
        %2336 = vmatprep.subr.bf16.mxu0 0
        %2337 = vmatpush1.bf16.msra.mxu0 0
        %2338 = vmatprep.subr.bf16.mxu0 0
        %2339 = vmatpush1.bf16.msra.mxu0 0
        %2340 = vmatprep.subr.bf16.mxu0 0
        %2341 = vmatpush1.bf16.msra.mxu0 %v2324
        %2342 = vmatprep.subr.bf16.mxu0 0
        %2343 = vmatpush2.bf16.msra.mxu0 0
        %2344 = vmatprep.subr.bf16.mxu0 0
        %2345 = vmatpush2.bf16.msra.mxu0 0
        %2346 = vmatprep.subr.bf16.mxu0 0
        %2347 = vmatpush2.bf16.msra.mxu0 0
        %2348 = vmatprep.subr.bf16.mxu0 0
        %2349 = vmatpush2.bf16.msra.mxu0 0
        %2350 = vmatprep.subr.bf16.mxu0 0
        %2351 = vmatpush2.bf16.msra.mxu0 0
        %2352 = vmatprep.subr.bf16.mxu0 0
        %2353 = vmatpush2.bf16.msra.mxu0 0
        %2354 = vmatprep.subr.bf16.mxu0 0
        %2355 = vmatpush2.bf16.msra.mxu0 0
        %2356 = vmatprep.subr.bf16.mxu0 0
        %2357 = vmatpush2.bf16.msra.mxu0 0
        %2358 = vmatprep.mubr.bf16.mxu0 0
        %2359 = vmatmul.mubr.bf16.gmra.mxu0 %v2321
        %v2360 = vpop.f32.mrf.mxu0
        %v2361 = vadd.f32 0.0, %v2360
        %v2362 = vpop.f32.mrf.mxu0
        %v2363 = vpop.f32.mrf.mxu0
        %v2364 = vpop.f32.mrf.mxu0
        %2365 = vdwg.mxu0
        %v2367 = vsel %vm688, %v2034, 0
        %v2370 = vsel %vm2046, %v340, 0
        %2372 = vmatprep.subr.bf16.mxu0 0
        %2373 = vmatpush1.bf16.msra.mxu0 0
        %2374 = vmatprep.subr.bf16.mxu0 0
        %2375 = vmatpush1.bf16.msra.mxu0 0
        %2376 = vmatprep.subr.bf16.mxu0 0
        %2377 = vmatpush1.bf16.msra.mxu0 0
        %2378 = vmatprep.subr.bf16.mxu0 0
        %2379 = vmatpush1.bf16.msra.mxu0 0
        %2380 = vmatprep.subr.bf16.mxu0 0
        %2381 = vmatpush1.bf16.msra.mxu0 0
        %2382 = vmatprep.subr.bf16.mxu0 0
        %2383 = vmatpush1.bf16.msra.mxu0 0
        %2384 = vmatprep.subr.bf16.mxu0 0
        %2385 = vmatpush1.bf16.msra.mxu0 0
        %2386 = vmatprep.subr.bf16.mxu0 0
        %2387 = vmatpush1.bf16.msra.mxu0 %v2370
        %2388 = vmatprep.subr.bf16.mxu0 0
        %2389 = vmatpush2.bf16.msra.mxu0 0
        %2390 = vmatprep.subr.bf16.mxu0 0
        %2391 = vmatpush2.bf16.msra.mxu0 0
        %2392 = vmatprep.subr.bf16.mxu0 0
        %2393 = vmatpush2.bf16.msra.mxu0 0
        %2394 = vmatprep.subr.bf16.mxu0 0
        %2395 = vmatpush2.bf16.msra.mxu0 0
        %2396 = vmatprep.subr.bf16.mxu0 0
        %2397 = vmatpush2.bf16.msra.mxu0 0
        %2398 = vmatprep.subr.bf16.mxu0 0
        %2399 = vmatpush2.bf16.msra.mxu0 0
        %2400 = vmatprep.subr.bf16.mxu0 0
        %2401 = vmatpush2.bf16.msra.mxu0 0
        %2402 = vmatprep.subr.bf16.mxu0 0
        %2403 = vmatpush2.bf16.msra.mxu0 0
        %2404 = vmatprep.mubr.bf16.mxu0 0
        %2405 = vmatmul.mubr.bf16.gmra.mxu0 %v2367
        %v2406 = vpop.f32.mrf.mxu0
        %v2407 = vadd.f32 0.0, %v2406
        %v2408 = vpop.f32.mrf.mxu0
        %v2409 = vpop.f32.mrf.mxu0
        %v2410 = vpop.f32.mrf.mxu0
        %2411 = vdwg.mxu0
        %v2413 = vsel %vm688, %v2035, 0
        %v2416 = vsel %vm2046, %v341, 0
        %2418 = vmatprep.subr.bf16.mxu0 0
        %2419 = vmatpush1.bf16.msra.mxu0 0
        %2420 = vmatprep.subr.bf16.mxu0 0
        %2421 = vmatpush1.bf16.msra.mxu0 0
        %2422 = vmatprep.subr.bf16.mxu0 0
        %2423 = vmatpush1.bf16.msra.mxu0 0
        %2424 = vmatprep.subr.bf16.mxu0 0
        %2425 = vmatpush1.bf16.msra.mxu0 0
        %2426 = vmatprep.subr.bf16.mxu0 0
        %2427 = vmatpush1.bf16.msra.mxu0 0
        %2428 = vmatprep.subr.bf16.mxu0 0
        %2429 = vmatpush1.bf16.msra.mxu0 0
        %2430 = vmatprep.subr.bf16.mxu0 0
        %2431 = vmatpush1.bf16.msra.mxu0 0
        %2432 = vmatprep.subr.bf16.mxu0 0
        %2433 = vmatpush1.bf16.msra.mxu0 %v2416
        %2434 = vmatprep.subr.bf16.mxu0 0
        %2435 = vmatpush2.bf16.msra.mxu0 0
        %2436 = vmatprep.subr.bf16.mxu0 0
        %2437 = vmatpush2.bf16.msra.mxu0 0
        %2438 = vmatprep.subr.bf16.mxu0 0
        %2439 = vmatpush2.bf16.msra.mxu0 0
        %2440 = vmatprep.subr.bf16.mxu0 0
        %2441 = vmatpush2.bf16.msra.mxu0 0
        %2442 = vmatprep.subr.bf16.mxu0 0
        %2443 = vmatpush2.bf16.msra.mxu0 0
        %2444 = vmatprep.subr.bf16.mxu0 0
        %2445 = vmatpush2.bf16.msra.mxu0 0
        %2446 = vmatprep.subr.bf16.mxu0 0
        %2447 = vmatpush2.bf16.msra.mxu0 0
        %2448 = vmatprep.subr.bf16.mxu0 0
        %2449 = vmatpush2.bf16.msra.mxu0 0
        %2450 = vmatprep.mubr.bf16.mxu0 0
        %2451 = vmatmul.mubr.bf16.gmra.mxu0 %v2413
        %v2452 = vpop.f32.mrf.mxu0
        %v2453 = vadd.f32 0.0, %v2452
        %v2454 = vpop.f32.mrf.mxu0
        %v2455 = vpop.f32.mrf.mxu0
        %v2456 = vpop.f32.mrf.mxu0
        %2457 = vdwg.mxu0
        %v2459 = vsel %vm688, %v2036, 0
        %v2462 = vsel %vm2046, %v342, 0
        %2464 = vmatprep.subr.bf16.mxu0 0
        %2465 = vmatpush1.bf16.msra.mxu0 0
        %2466 = vmatprep.subr.bf16.mxu0 0
        %2467 = vmatpush1.bf16.msra.mxu0 0
        %2468 = vmatprep.subr.bf16.mxu0 0
        %2469 = vmatpush1.bf16.msra.mxu0 0
        %2470 = vmatprep.subr.bf16.mxu0 0
        %2471 = vmatpush1.bf16.msra.mxu0 0
        %2472 = vmatprep.subr.bf16.mxu0 0
        %2473 = vmatpush1.bf16.msra.mxu0 0
        %2474 = vmatprep.subr.bf16.mxu0 0
        %2475 = vmatpush1.bf16.msra.mxu0 0
        %2476 = vmatprep.subr.bf16.mxu0 0
        %2477 = vmatpush1.bf16.msra.mxu0 0
        %2478 = vmatprep.subr.bf16.mxu0 0
        %2479 = vmatpush1.bf16.msra.mxu0 %v2462
        %2480 = vmatprep.subr.bf16.mxu0 0
        %2481 = vmatpush2.bf16.msra.mxu0 0
        %2482 = vmatprep.subr.bf16.mxu0 0
        %2483 = vmatpush2.bf16.msra.mxu0 0
        %2484 = vmatprep.subr.bf16.mxu0 0
        %2485 = vmatpush2.bf16.msra.mxu0 0
        %2486 = vmatprep.subr.bf16.mxu0 0
        %2487 = vmatpush2.bf16.msra.mxu0 0
        %2488 = vmatprep.subr.bf16.mxu0 0
        %2489 = vmatpush2.bf16.msra.mxu0 0
        %2490 = vmatprep.subr.bf16.mxu0 0
        %2491 = vmatpush2.bf16.msra.mxu0 0
        %2492 = vmatprep.subr.bf16.mxu0 0
        %2493 = vmatpush2.bf16.msra.mxu0 0
        %2494 = vmatprep.subr.bf16.mxu0 0
        %2495 = vmatpush2.bf16.msra.mxu0 0
        %2496 = vmatprep.mubr.bf16.mxu0 0
        %2497 = vmatmul.mubr.bf16.gmra.mxu0 %v2459
        %v2498 = vpop.f32.mrf.mxu0
        %v2499 = vadd.f32 0.0, %v2498
        %v2500 = vpop.f32.mrf.mxu0
        %v2501 = vpop.f32.mrf.mxu0
        %v2502 = vpop.f32.mrf.mxu0
        %2503 = vdwg.mxu0
        %v2505 = vsel %vm688, %v2037, 0
        %v2508 = vsel %vm2046, %v343, 0
        %2510 = vmatprep.subr.bf16.mxu0 0
        %2511 = vmatpush1.bf16.msra.mxu0 0
        %2512 = vmatprep.subr.bf16.mxu0 0
        %2513 = vmatpush1.bf16.msra.mxu0 0
        %2514 = vmatprep.subr.bf16.mxu0 0
        %2515 = vmatpush1.bf16.msra.mxu0 0
        %2516 = vmatprep.subr.bf16.mxu0 0
        %2517 = vmatpush1.bf16.msra.mxu0 0
        %2518 = vmatprep.subr.bf16.mxu0 0
        %2519 = vmatpush1.bf16.msra.mxu0 0
        %2520 = vmatprep.subr.bf16.mxu0 0
        %2521 = vmatpush1.bf16.msra.mxu0 0
        %2522 = vmatprep.subr.bf16.mxu0 0
        %2523 = vmatpush1.bf16.msra.mxu0 0
        %2524 = vmatprep.subr.bf16.mxu0 0
        %2525 = vmatpush1.bf16.msra.mxu0 %v2508
        %2526 = vmatprep.subr.bf16.mxu0 0
        %2527 = vmatpush2.bf16.msra.mxu0 0
        %2528 = vmatprep.subr.bf16.mxu0 0
        %2529 = vmatpush2.bf16.msra.mxu0 0
        %2530 = vmatprep.subr.bf16.mxu0 0
        %2531 = vmatpush2.bf16.msra.mxu0 0
        %2532 = vmatprep.subr.bf16.mxu0 0
        %2533 = vmatpush2.bf16.msra.mxu0 0
        %2534 = vmatprep.subr.bf16.mxu0 0
        %2535 = vmatpush2.bf16.msra.mxu0 0
        %2536 = vmatprep.subr.bf16.mxu0 0
        %2537 = vmatpush2.bf16.msra.mxu0 0
        %2538 = vmatprep.subr.bf16.mxu0 0
        %2539 = vmatpush2.bf16.msra.mxu0 0
        %2540 = vmatprep.subr.bf16.mxu0 0
        %2541 = vmatpush2.bf16.msra.mxu0 0
        %2542 = vmatprep.mubr.bf16.mxu0 0
        %2543 = vmatmul.mubr.bf16.gmra.mxu0 %v2505
        %v2544 = vpop.f32.mrf.mxu0
        %v2545 = vadd.f32 0.0, %v2544
        %v2546 = vpop.f32.mrf.mxu0
        %v2547 = vpop.f32.mrf.mxu0
        %v2548 = vpop.f32.mrf.mxu0
        %2549 = vdwg.mxu0
        %v2551 = vsel %vm688, %v2038, 0
        %v2554 = vsel %vm2046, %v344, 0
        %2556 = vmatprep.subr.bf16.mxu0 0
        %2557 = vmatpush1.bf16.msra.mxu0 0
        %2558 = vmatprep.subr.bf16.mxu0 0
        %2559 = vmatpush1.bf16.msra.mxu0 0
        %2560 = vmatprep.subr.bf16.mxu0 0
        %2561 = vmatpush1.bf16.msra.mxu0 0
        %2562 = vmatprep.subr.bf16.mxu0 0
        %2563 = vmatpush1.bf16.msra.mxu0 0
        %2564 = vmatprep.subr.bf16.mxu0 0
        %2565 = vmatpush1.bf16.msra.mxu0 0
        %2566 = vmatprep.subr.bf16.mxu0 0
        %2567 = vmatpush1.bf16.msra.mxu0 0
        %2568 = vmatprep.subr.bf16.mxu0 0
        %2569 = vmatpush1.bf16.msra.mxu0 0
        %2570 = vmatprep.subr.bf16.mxu0 0
        %2571 = vmatpush1.bf16.msra.mxu0 %v2554
        %2572 = vmatprep.subr.bf16.mxu0 0
        %2573 = vmatpush2.bf16.msra.mxu0 0
        %2574 = vmatprep.subr.bf16.mxu0 0
        %2575 = vmatpush2.bf16.msra.mxu0 0
        %2576 = vmatprep.subr.bf16.mxu0 0
        %2577 = vmatpush2.bf16.msra.mxu0 0
        %2578 = vmatprep.subr.bf16.mxu0 0
        %2579 = vmatpush2.bf16.msra.mxu0 0
        %2580 = vmatprep.subr.bf16.mxu0 0
        %2581 = vmatpush2.bf16.msra.mxu0 0
        %2582 = vmatprep.subr.bf16.mxu0 0
        %2583 = vmatpush2.bf16.msra.mxu0 0
        %2584 = vmatprep.subr.bf16.mxu0 0
        %2585 = vmatpush2.bf16.msra.mxu0 0
        %2586 = vmatprep.subr.bf16.mxu0 0
        %2587 = vmatpush2.bf16.msra.mxu0 0
        %2588 = vmatprep.mubr.bf16.mxu0 0
        %2589 = vmatmul.mubr.bf16.gmra.mxu0 %v2551
        %v2590 = vpop.f32.mrf.mxu0
        %v2591 = vadd.f32 0.0, %v2590
        %v2592 = vpop.f32.mrf.mxu0
        %v2593 = vpop.f32.mrf.mxu0
        %v2594 = vpop.f32.mrf.mxu0
        %2595 = vdwg.mxu0
        %v2597 = vsel %vm688, %v2039, 0
        %v2600 = vsel %vm2046, %v345, 0
        %2602 = vmatprep.subr.bf16.mxu0 0
        %2603 = vmatpush1.bf16.msra.mxu0 0
        %2604 = vmatprep.subr.bf16.mxu0 0
        %2605 = vmatpush1.bf16.msra.mxu0 0
        %2606 = vmatprep.subr.bf16.mxu0 0
        %2607 = vmatpush1.bf16.msra.mxu0 0
        %2608 = vmatprep.subr.bf16.mxu0 0
        %2609 = vmatpush1.bf16.msra.mxu0 0
        %2610 = vmatprep.subr.bf16.mxu0 0
        %2611 = vmatpush1.bf16.msra.mxu0 0
        %2612 = vmatprep.subr.bf16.mxu0 0
        %2613 = vmatpush1.bf16.msra.mxu0 0
        %2614 = vmatprep.subr.bf16.mxu0 0
        %2615 = vmatpush1.bf16.msra.mxu0 0
        %2616 = vmatprep.subr.bf16.mxu0 0
        %2617 = vmatpush1.bf16.msra.mxu0 %v2600
        %2618 = vmatprep.subr.bf16.mxu0 0
        %2619 = vmatpush2.bf16.msra.mxu0 0
        %2620 = vmatprep.subr.bf16.mxu0 0
        %2621 = vmatpush2.bf16.msra.mxu0 0
        %2622 = vmatprep.subr.bf16.mxu0 0
        %2623 = vmatpush2.bf16.msra.mxu0 0
        %2624 = vmatprep.subr.bf16.mxu0 0
        %2625 = vmatpush2.bf16.msra.mxu0 0
        %2626 = vmatprep.subr.bf16.mxu0 0
        %2627 = vmatpush2.bf16.msra.mxu0 0
        %2628 = vmatprep.subr.bf16.mxu0 0
        %2629 = vmatpush2.bf16.msra.mxu0 0
        %2630 = vmatprep.subr.bf16.mxu0 0
        %2631 = vmatpush2.bf16.msra.mxu0 0
        %2632 = vmatprep.subr.bf16.mxu0 0
        %2633 = vmatpush2.bf16.msra.mxu0 0
        %2634 = vmatprep.mubr.bf16.mxu0 0
        %2635 = vmatmul.mubr.bf16.gmra.mxu0 %v2597
        %v2636 = vpop.f32.mrf.mxu0
        %v2637 = vadd.f32 0.0, %v2636
        %v2638 = vpop.f32.mrf.mxu0
        %v2639 = vpop.f32.mrf.mxu0
        %v2640 = vpop.f32.mrf.mxu0
        %2641 = vdwg.mxu0
        %v2643 = vsel %vm688, %v2040, 0
        %v2646 = vsel %vm2046, %v346, 0
        %2648 = vmatprep.subr.bf16.mxu0 0
        %2649 = vmatpush1.bf16.msra.mxu0 0
        %2650 = vmatprep.subr.bf16.mxu0 0
        %2651 = vmatpush1.bf16.msra.mxu0 0
        %2652 = vmatprep.subr.bf16.mxu0 0
        %2653 = vmatpush1.bf16.msra.mxu0 0
        %2654 = vmatprep.subr.bf16.mxu0 0
        %2655 = vmatpush1.bf16.msra.mxu0 0
        %2656 = vmatprep.subr.bf16.mxu0 0
        %2657 = vmatpush1.bf16.msra.mxu0 0
        %2658 = vmatprep.subr.bf16.mxu0 0
        %2659 = vmatpush1.bf16.msra.mxu0 0
        %2660 = vmatprep.subr.bf16.mxu0 0
        %2661 = vmatpush1.bf16.msra.mxu0 0
        %2662 = vmatprep.subr.bf16.mxu0 0
        %2663 = vmatpush1.bf16.msra.mxu0 %v2646
        %2664 = vmatprep.subr.bf16.mxu0 0
        %2665 = vmatpush2.bf16.msra.mxu0 0
        %2666 = vmatprep.subr.bf16.mxu0 0
        %2667 = vmatpush2.bf16.msra.mxu0 0
        %2668 = vmatprep.subr.bf16.mxu0 0
        %2669 = vmatpush2.bf16.msra.mxu0 0
        %2670 = vmatprep.subr.bf16.mxu0 0
        %2671 = vmatpush2.bf16.msra.mxu0 0
        %2672 = vmatprep.subr.bf16.mxu0 0
        %2673 = vmatpush2.bf16.msra.mxu0 0
        %2674 = vmatprep.subr.bf16.mxu0 0
        %2675 = vmatpush2.bf16.msra.mxu0 0
        %2676 = vmatprep.subr.bf16.mxu0 0
        %2677 = vmatpush2.bf16.msra.mxu0 0
        %2678 = vmatprep.subr.bf16.mxu0 0
        %2679 = vmatpush2.bf16.msra.mxu0 0
        %2680 = vmatprep.mubr.bf16.mxu0 0
        %2681 = vmatmul.mubr.bf16.gmra.mxu0 %v2643
        %v2682 = vpop.f32.mrf.mxu0
        %v2683 = vadd.f32 0.0, %v2682
        %v2684 = vpop.f32.mrf.mxu0
        %v2685 = vpop.f32.mrf.mxu0
        %v2686 = vpop.f32.mrf.mxu0
        %2687 = vdwg.mxu0
        %v2689 = vsel %vm688, %v2041, 0
        %v2692 = vsel %vm2046, %v347, 0
        %2694 = vmatprep.subr.bf16.mxu0 0
        %2695 = vmatpush1.bf16.msra.mxu0 0
        %2696 = vmatprep.subr.bf16.mxu0 0
        %2697 = vmatpush1.bf16.msra.mxu0 0
        %2698 = vmatprep.subr.bf16.mxu0 0
        %2699 = vmatpush1.bf16.msra.mxu0 0
        %2700 = vmatprep.subr.bf16.mxu0 0
        %2701 = vmatpush1.bf16.msra.mxu0 0
        %2702 = vmatprep.subr.bf16.mxu0 0
        %2703 = vmatpush1.bf16.msra.mxu0 0
        %2704 = vmatprep.subr.bf16.mxu0 0
        %2705 = vmatpush1.bf16.msra.mxu0 0
        %2706 = vmatprep.subr.bf16.mxu0 0
        %2707 = vmatpush1.bf16.msra.mxu0 0
        %2708 = vmatprep.subr.bf16.mxu0 0
        %2709 = vmatpush1.bf16.msra.mxu0 %v2692
        %2710 = vmatprep.subr.bf16.mxu0 0
        %2711 = vmatpush2.bf16.msra.mxu0 0
        %2712 = vmatprep.subr.bf16.mxu0 0
        %2713 = vmatpush2.bf16.msra.mxu0 0
        %2714 = vmatprep.subr.bf16.mxu0 0
        %2715 = vmatpush2.bf16.msra.mxu0 0
        %2716 = vmatprep.subr.bf16.mxu0 0
        %2717 = vmatpush2.bf16.msra.mxu0 0
        %2718 = vmatprep.subr.bf16.mxu0 0
        %2719 = vmatpush2.bf16.msra.mxu0 0
        %2720 = vmatprep.subr.bf16.mxu0 0
        %2721 = vmatpush2.bf16.msra.mxu0 0
        %2722 = vmatprep.subr.bf16.mxu0 0
        %2723 = vmatpush2.bf16.msra.mxu0 0
        %2724 = vmatprep.subr.bf16.mxu0 0
        %2725 = vmatpush2.bf16.msra.mxu0 0
        %2726 = vmatprep.mubr.bf16.mxu0 0
        %2727 = vmatmul.mubr.bf16.gmra.mxu0 %v2689
        %v2728 = vpop.f32.mrf.mxu0
        %v2729 = vadd.f32 0.0, %v2728
        %v2730 = vpop.f32.mrf.mxu0
        %v2731 = vpop.f32.mrf.mxu0
        %v2732 = vpop.f32.mrf.mxu0
        %2733 = vdwg.mxu0
        %v2735 = vsel %vm688, %v2042, 0
        %v2738 = vsel %vm2046, %v348, 0
        %2740 = vmatprep.subr.bf16.mxu0 0
        %2741 = vmatpush1.bf16.msra.mxu0 0
        %2742 = vmatprep.subr.bf16.mxu0 0
        %2743 = vmatpush1.bf16.msra.mxu0 0
        %2744 = vmatprep.subr.bf16.mxu0 0
        %2745 = vmatpush1.bf16.msra.mxu0 0
        %2746 = vmatprep.subr.bf16.mxu0 0
        %2747 = vmatpush1.bf16.msra.mxu0 0
        %2748 = vmatprep.subr.bf16.mxu0 0
        %2749 = vmatpush1.bf16.msra.mxu0 0
        %2750 = vmatprep.subr.bf16.mxu0 0
        %2751 = vmatpush1.bf16.msra.mxu0 0
        %2752 = vmatprep.subr.bf16.mxu0 0
        %2753 = vmatpush1.bf16.msra.mxu0 0
        %2754 = vmatprep.subr.bf16.mxu0 0
        %2755 = vmatpush1.bf16.msra.mxu0 %v2738
        %2756 = vmatprep.subr.bf16.mxu0 0
        %2757 = vmatpush2.bf16.msra.mxu0 0
        %2758 = vmatprep.subr.bf16.mxu0 0
        %2759 = vmatpush2.bf16.msra.mxu0 0
        %2760 = vmatprep.subr.bf16.mxu0 0
        %2761 = vmatpush2.bf16.msra.mxu0 0
        %2762 = vmatprep.subr.bf16.mxu0 0
        %2763 = vmatpush2.bf16.msra.mxu0 0
        %2764 = vmatprep.subr.bf16.mxu0 0
        %2765 = vmatpush2.bf16.msra.mxu0 0
        %2766 = vmatprep.subr.bf16.mxu0 0
        %2767 = vmatpush2.bf16.msra.mxu0 0
        %2768 = vmatprep.subr.bf16.mxu0 0
        %2769 = vmatpush2.bf16.msra.mxu0 0
        %2770 = vmatprep.subr.bf16.mxu0 0
        %2771 = vmatpush2.bf16.msra.mxu0 0
        %2772 = vmatprep.mubr.bf16.mxu0 0
        %2773 = vmatmul.mubr.bf16.gmra.mxu0 %v2735
        %v2774 = vpop.f32.mrf.mxu0
        %v2775 = vadd.f32 0.0, %v2774
        %v2776 = vpop.f32.mrf.mxu0
        %v2777 = vpop.f32.mrf.mxu0
        %v2778 = vpop.f32.mrf.mxu0
        %2779 = vdwg.mxu0
        %v2780 = vadd.f32 %v691, 1e-09
        %v2781 = vadd.f32 %v694, 1e-09
        %v2784 = vrot.slane %v2780, 1
        %v2785 = vrot.slane %v2780, 2
        %v2786 = vrot.slane %v2780, 3
        %v2787 = vrot.slane %v2780, 4
        %v2788 = vrot.slane %v2780, 5
        %v2789 = vrot.slane %v2780, 6
        %v2790 = vrot.slane %v2780, 7
        %v2791 = vrot.slane %v2781, 1
        %v2792 = vrot.slane %v2781, 2
        %v2793 = vrot.slane %v2781, 3
        %v2794 = vrot.slane %v2781, 4
        %v2795 = vrot.slane %v2781, 5
        %v2796 = vrot.slane %v2781, 6
        %v2797 = vrot.slane %v2781, 7
        %v2814 = vrcp.pop %v2780
        %v2815 = vmul.f32 %v2085, %v2814
        %v2816 = vrcp.pop %v2784
        %v2817 = vmul.f32 %v2131, %v2816
        %v2818 = vrcp.pop %v2785
        %v2819 = vmul.f32 %v2177, %v2818
        %v2820 = vrcp.pop %v2786
        %v2821 = vmul.f32 %v2223, %v2820
        %v2822 = vrcp.pop %v2787
        %v2823 = vmul.f32 %v2269, %v2822
        %v2824 = vrcp.pop %v2788
        %v2825 = vmul.f32 %v2315, %v2824
        %v2826 = vrcp.pop %v2789
        %v2827 = vmul.f32 %v2361, %v2826
        %v2828 = vrcp.pop %v2790
        %v2829 = vmul.f32 %v2407, %v2828
        %v2830 = vrcp.pop %v2781
        %v2831 = vmul.f32 %v2453, %v2830
        %v2832 = vrcp.pop %v2791
        %v2833 = vmul.f32 %v2499, %v2832
        %v2834 = vrcp.pop %v2792
        %v2835 = vmul.f32 %v2545, %v2834
        %v2836 = vrcp.pop %v2793
        %v2837 = vmul.f32 %v2591, %v2836
        %v2838 = vrcp.pop %v2794
        %v2839 = vmul.f32 %v2637, %v2838
        %v2840 = vrcp.pop %v2795
        %v2841 = vmul.f32 %v2683, %v2840
        %v2842 = vrcp.pop %v2796
        %v2843 = vmul.f32 %v2729, %v2842
        %v2844 = vrcp.pop %v2797
        %v2845 = vmul.f32 %v2775, %v2844
        %s2846 = sld [smem:[#allocation2]]
        %v2847 = vstv %s2846
        %v2848 = vmul.f32 %v2847, %v2815
        %v2849 = vmul.f32 %v2847, %v2817
        %v2850 = vmul.f32 %v2847, %v2819
        %v2851 = vmul.f32 %v2847, %v2821
        %v2852 = vmul.f32 %v2847, %v2823
        %v2853 = vmul.f32 %v2847, %v2825
        %v2854 = vmul.f32 %v2847, %v2827
        %v2855 = vmul.f32 %v2847, %v2829
        %v2856 = vmul.f32 %v2847, %v2831
        %v2857 = vmul.f32 %v2847, %v2833
        %v2858 = vmul.f32 %v2847, %v2835
        %v2859 = vmul.f32 %v2847, %v2837
        %v2860 = vmul.f32 %v2847, %v2839
        %v2861 = vmul.f32 %v2847, %v2841
        %v2862 = vmul.f32 %v2847, %v2843
        %v2863 = vmul.f32 %v2847, %v2845
        %s2864 = ssub.f32 1.0, %s2846
        %v2865 = vld [vmem:[%s329] sm:$0xff]
        %v2866 = vld [vmem:[%s329 + $0x8] sm:$0xff]
        %v2867 = vstv %s2864
        %v2868 = vmul.f32 %v2867, %v2865
        %v2869 = vmul.f32 %v2867, %v2866
        %v2872 = vrot.slane %v2868, 1
        %v2873 = vrot.slane %v2868, 2
        %v2874 = vrot.slane %v2868, 3
        %v2875 = vrot.slane %v2868, 4
        %v2876 = vrot.slane %v2868, 5
        %v2877 = vrot.slane %v2868, 6
        %v2878 = vrot.slane %v2868, 7
        %v2879 = vrot.slane %v2869, 1
        %v2880 = vrot.slane %v2869, 2
        %v2881 = vrot.slane %v2869, 3
        %v2882 = vrot.slane %v2869, 4
        %v2883 = vrot.slane %v2869, 5
        %v2884 = vrot.slane %v2869, 6
        %v2885 = vrot.slane %v2869, 7
        %v2902 = vadd.f32 %v2848, %v2868
        %v2903 = vadd.f32 %v2849, %v2872
        %v2904 = vadd.f32 %v2850, %v2873
        %v2905 = vadd.f32 %v2851, %v2874
        %v2906 = vadd.f32 %v2852, %v2875
        %v2907 = vadd.f32 %v2853, %v2876
        %v2908 = vadd.f32 %v2854, %v2877
        %v2909 = vadd.f32 %v2855, %v2878
        %v2910 = vadd.f32 %v2856, %v2869
        %v2911 = vadd.f32 %v2857, %v2879
        %v2912 = vadd.f32 %v2858, %v2880
        %v2913 = vadd.f32 %v2859, %v2881
        %v2914 = vadd.f32 %v2860, %v2882
        %v2915 = vadd.f32 %v2861, %v2883
        %v2916 = vadd.f32 %v2862, %v2884
        %v2917 = vadd.f32 %v2863, %v2885
        %v2934 = vrot.slane %v2903, 7
        %vm2935 = vcmask 1041409
        %v2936 = vsel %vm2935, %v2934, %v2902
        %v2937 = vrot.slane %v2904, 6
        %vm2938 = vcmask 1042434
        %v2939 = vsel %vm2938, %v2937, %v2936
        %v2940 = vrot.slane %v2905, 5
        %vm2941 = vcmask 1043459
        %v2942 = vsel %vm2941, %v2940, %v2939
        %v2943 = vrot.slane %v2906, 4
        %vm2944 = vcmask 1044484
        %v2945 = vsel %vm2944, %v2943, %v2942
        %v2946 = vrot.slane %v2907, 3
        %vm2947 = vcmask 1045509
        %v2948 = vsel %vm2947, %v2946, %v2945
        %v2949 = vrot.slane %v2908, 2
        %vm2950 = vcmask 1046534
        %v2951 = vsel %vm2950, %v2949, %v2948
        %v2952 = vrot.slane %v2909, 1
        %vm2953 = vcmask 1047559
        %v2954 = vsel %vm2953, %v2952, %v2951
        %v2955 = vrot.slane %v2911, 7
        %v2956 = vsel %vm2935, %v2955, %v2910
        %v2957 = vrot.slane %v2912, 6
        %v2958 = vsel %vm2938, %v2957, %v2956
        %v2959 = vrot.slane %v2913, 5
        %v2960 = vsel %vm2941, %v2959, %v2958
        %v2961 = vrot.slane %v2914, 4
        %v2962 = vsel %vm2944, %v2961, %v2960
        %v2963 = vrot.slane %v2915, 3
        %v2964 = vsel %vm2947, %v2963, %v2962
        %v2965 = vrot.slane %v2916, 2
        %v2966 = vsel %vm2950, %v2965, %v2964
        %v2967 = vrot.slane %v2917, 1
        %v2968 = vsel %vm2953, %v2967, %v2966
        %2971 = vst.msk [vmem:[%s317] sm:$0xff] %vm405, %v2954
        %2972 = vst.msk [vmem:[%s317 + $0x8] sm:$0xff] %vm405, %v2968
        %s2973 = sand.u32 %s174, 1
        %s2974 = scalar_lea.sflag [#allocation5], %s2973
        %s2975 = sand.u32 %s174, 1
        %s2976 = smul.addr %s2975, 16
        %s2977 = scalar_lea.vmem [#allocation8], %s2976
        // Predicated region
        $region53: #{tpu_custom_call.1} parent=43 // pred_check
          %p2978 = pneg %p184
        $region54: #{tpu_custom_call.1} parent=43 // pred_check_branch
          %2980 = sbr.rel (%p2978) target = $region56
        $region55: #{tpu_custom_call.1} parent=43 // pred_region
          %s2981 = smul.u32 2, %s25
          %s2983 = ssub.s32 256, 256
          %2984 = vsyncadd %s2974, %s2983
          %s2985 = smul.addr %s2981, 128
          %s2986 = scalar_lea.hbm %s6, %s2985
          %s2987 = sshll.u32 %s2977, 4
          %s2988 = int_to_ptr.vmem [resolvable:$true] %s2987
          %2993 = dma.vmem_to_hbm [thread:$0]  %s2988, 256, %s2986, %s2974, 128, 128, 8
        $region56: #{tpu_custom_call.1} parent=43 // pred_fallthru
          _
      $region44: #{tpu_custom_call.1} parent=5 // pred_fallthru
        _
      %p2994 = scmp.le.s32.totalorder 2, %s20
      // Predicated region
      $region57: #{tpu_custom_call.1} parent=5 // pred_check
        %p2995 = pneg %p2994
      $region58: #{tpu_custom_call.1} parent=5 // pred_check_branch
        %2997 = sbr.rel (%p2995) target = $region60
      $region59: #{tpu_custom_call.1} parent=5 // pred_region
        %s2998 = ssub.s32 %s20, 2
        // Predicated region
        $region61: #{tpu_custom_call.1} parent=59 // pred_check
          %p2999 = pneg %p190
        $region62: #{tpu_custom_call.1} parent=59 // pred_check_branch
          %3001 = sbr.rel (%p2999) target = $region64
        $region63: #{tpu_custom_call.1} parent=59 // pred_region
          %s3002 = sand.u32 %s175, 1
          %s3003 = scalar_lea.sflag [#allocation5], %s3002
          %s3004 = sand.u32 %s175, 1
          %s3005 = smul.addr %s3004, 16
          %s3006 = scalar_lea.vmem [#allocation8], %s3005
          %3007 = dma.done %s3003, 256
        $region64: #{tpu_custom_call.1} parent=59 // pred_fallthru
          _
      $region60: #{tpu_custom_call.1} parent=5 // pred_fallthru
        _
    $region6: #{tpu_custom_call.1} parent=1 // loop_footer
      %s24 = sadd.s32 1, %s20
    $region7: #{tpu_custom_call.1} parent=1 // loop_footer_branch
      %19 = sbr.rel target = $region3
    $region8: #{tpu_custom_call.1} parent=1 // loop_exit
      _
    %3008 = vsyncpa [#allocation4], 1
    %s3009 = scalar_lea.sflag [#allocation4], 1
    %3010 = vsyncpa %s3009, 1
    %3011 = vsyncpa [#allocation7], 1
    %s3012 = scalar_lea.sflag [#allocation7], 1
    %3013 = vsyncpa %s3012, 1
    %3014 = vsyncpa [#allocation5], 1
    %s3015 = scalar_lea.sflag [#allocation5], 1
    %3016 = vsyncpa %s3015, 1

</llo_original>
